<compile_context>
chip_gen: v7x
topology: tpu7x:2x2x1
jax: 0.10.0
libtpu: 0.0.40
codegen_flags: <defaults>
</compile_context>

<pallas_src>
import functools

import jax
import jax.numpy as jnp
from jax import lax
from jax.experimental import pallas as pl
from jax.experimental.pallas import tpu as pltpu


# ---------------------------------------------------------------------------
# Single fused kernel: LayerNorm x2 + q/k/v projections + MHA + out projection
# One grid step == one batch element; everything stays on-chip.
# ---------------------------------------------------------------------------
def _fused_attention_kernel(x_ref, ln_g_ref, ln_b_ref, lnc_g_ref, lnc_b_ref,
                            wq_ref, wk_ref, wv_ref, wo_ref, bo_ref, o_ref, *,
                            scale, causal, compute_dtype):
    H = wq_ref.shape[0]                                  # num heads
    x = x_ref[0].astype(jnp.float32)                     # (N, F)
    N = x.shape[0]

    def layernorm(t, g, b):                              # stats in f32
        mu = jnp.mean(t, axis=-1, keepdims=True)
        var = jnp.mean((t - mu) ** 2, axis=-1, keepdims=True)
        return (t - mu) * lax.rsqrt(var + 1e-5) * g + b  # PyTorch eps = 1e-5

    xq = layernorm(x, ln_g_ref[...], ln_b_ref[...])      # (N, F)
    xc = layernorm(x, lnc_g_ref[...], lnc_b_ref[...])    # (N, F)  (context = x)

    # Head-batched projections: (H, N, F) x (H, F, D) -> (H, N, D).
    # x is read from HBM once; the broadcast is register-level only.
    xq_b = jnp.broadcast_to(xq, (H,) + xq.shape).astype(compute_dtype)
    xc_b = jnp.broadcast_to(xc, (H,) + xc.shape).astype(compute_dtype)
    dn_proj = (((2,), (1,)), ((0,), (0,)))               # contract F, batch H
    q = lax.dot_general(xq_b, wq_ref[...].astype(compute_dtype), dn_proj,
                        preferred_element_type=jnp.float32)      # (H, N, D)
    k = lax.dot_general(xc_b, wk_ref[...].astype(compute_dtype), dn_proj,
                        preferred_element_type=jnp.float32)      # (H, M, D)
    v = lax.dot_general(xc_b, wv_ref[...].astype(compute_dtype), dn_proj,
                        preferred_element_type=jnp.float32)      # (H, M, D)

    # Fold softmax scale into q (smaller tile than scaling sim).
    q = q * scale

    # sim[h, n, m] = sum_d q[h, n, d] * k[h, m, d]  -- contracts on D directly,
    # no transpose materialized.
    sim = lax.dot_general(q.astype(compute_dtype), k.astype(compute_dtype),
                          (((2,), (2,)), ((0,), (0,))),
                          preferred_element_type=jnp.float32)    # (H, N, M)
    M = sim.shape[2]

    if causal:  # same mask as causal_mask(): allowed iff col <= row + (M - N)
        row = lax.broadcasted_iota(jnp.int32, sim.shape, 1)
        col = lax.broadcasted_iota(jnp.int32, sim.shape, 2)
        sim = jnp.where(col <= row + (M - N), sim,
                        -jnp.finfo(jnp.float32).max)

    # float32 softmax (matches sim.softmax(dim=-1, dtype=torch.float32));
    # reciprocal goes to the (otherwise idle) EUP slot.
    sim = sim - jnp.max(sim, axis=-1, keepdims=True)
    p = jnp.exp(sim)
    p = p * pl.reciprocal(jnp.sum(p, axis=-1, keepdims=True), approx=True)

    # out[h, n, d] = sum_m p[h, n, m] * v[h, m, d]
    out = lax.dot_general(p.astype(compute_dtype), v.astype(compute_dtype),
                          (((2,), (1,)), ((0,), (0,))),
                          preferred_element_type=jnp.float32)    # (H, N, D)

    # Output projection, head-batched then reduced over heads:
    #   y = concat_h(out_h) @ W_out = sum_h out_h @ W_out[h*D:(h+1)*D, :]
    y = lax.dot_general(out.astype(compute_dtype),
                        wo_ref[...].astype(compute_dtype),
                        (((2,), (1,)), ((0,), (0,))),
                        preferred_element_type=jnp.float32)      # (H, N, O)
    o_ref[0] = (jnp.sum(y, axis=0) + bo_ref[...]).astype(o_ref.dtype)


# ---------------------------------------------------------------------------
# One-time parameter layout preparation (done at "load time", not per call):
# split w_kv, move the head axis to the front of each projection weight.
# ---------------------------------------------------------------------------
def prepare_attention_params(params, *, num_heads, head_features):
    F = params["w_q"].shape[0]
    mid = num_heads * head_features
    out_f = params["w_out"].shape[1]
    H, D = num_heads, head_features

    def to_hfd(w):                       # (F, H*D) -> (H, F, D)
        return w.reshape(F, H, D).transpose(1, 0, 2)

    return {
        "ln_g": params["ln_g"].reshape(1, F),
        "ln_b": params["ln_b"].reshape(1, F),
        "lnc_g": params["lnc_g"].reshape(1, F),
        "lnc_b": params["lnc_b"].reshape(1, F),
        "wq3": to_hfd(params["w_q"]),
        "wk3": to_hfd(params["w_kv"][:, :mid]),
        "wv3": to_hfd(params["w_kv"][:, mid:]),
        "wo3": params["w_out"].reshape(H, D, out_f),     # (H, D, O)
        "b_out": params["b_out"].reshape(1, out_f),
    }


# ---------------------------------------------------------------------------
# Full module forward (self-attention path): single pallas_call over batch.
# ---------------------------------------------------------------------------
def attention_forward(x, kparams, *, num_heads, head_features, causal,
                      compute_dtype=jnp.float32):
    # compute_dtype=jnp.bfloat16 is recommended on v6e/v7x at real sizes
    # (MXU throughput); LN stats and softmax stay f32 either way.
    B, N, F = x.shape
    H, D = num_heads, head_features
    O = kparams["wo3"].shape[2]
    scale = head_features ** (-0.5)

    kernel = functools.partial(_fused_attention_kernel, scale=scale,
                               causal=causal, compute_dtype=compute_dtype)
    return pl.pallas_call(
        kernel,
        out_shape=jax.ShapeDtypeStruct((B, N, O), x.dtype),
        grid=(B,),
        in_specs=[
            pl.BlockSpec((1, N, F), lambda b: (b, 0, 0)),      # x (streamed)
            pl.BlockSpec((1, F), lambda b: (0, 0)),            # ln gamma
            pl.BlockSpec((1, F), lambda b: (0, 0)),            # ln beta
            pl.BlockSpec((1, F), lambda b: (0, 0)),            # ln_ctx gamma
            pl.BlockSpec((1, F), lambda b: (0, 0)),            # ln_ctx beta
            pl.BlockSpec((H, F, D), lambda b: (0, 0, 0)),      # W_q  (resident)
            pl.BlockSpec((H, F, D), lambda b: (0, 0, 0)),      # W_k  (resident)
            pl.BlockSpec((H, F, D), lambda b: (0, 0, 0)),      # W_v  (resident)
            pl.BlockSpec((H, D, O), lambda b: (0, 0, 0)),      # W_out (resident)
            pl.BlockSpec((1, O), lambda b: (0, 0)),            # b_out
        ],
        out_specs=pl.BlockSpec((1, N, O), lambda b: (b, 0, 0)),
        compiler_params=pltpu.CompilerParams(
            dimension_semantics=("parallel",)),
    )(x, kparams["ln_g"], kparams["ln_b"], kparams["lnc_g"], kparams["lnc_b"],
      kparams["wq3"], kparams["wk3"], kparams["wv3"], kparams["wo3"],
      kparams["b_out"])


# ---------------------------------------------------------------------------
# Pure-JAX reference mirroring the PyTorch forward (original param layout).
# ---------------------------------------------------------------------------
def attention_reference(x, params, *, num_heads, head_features, causal):
    B, N, F = x.shape
    mid = num_heads * head_features
    scale = head_features ** (-0.5)

    def ln(t, g, b):
        mu = jnp.mean(t, axis=-1, keepdims=True)
        var = jnp.mean((t - mu) ** 2, axis=-1, keepdims=True)
        return (t - mu) / jnp.sqrt(var + 1e-5) * g + b

    xq = ln(x, params["ln_g"], params["ln_b"])
    xc = ln(x, params["lnc_g"], params["lnc_b"])
    q = xq @ params["w_q"]
    kv = xc @ params["w_kv"]
    k, v = kv[..., :mid], kv[..., mid:]

    def split(t):
        return t.reshape(B, N, num_heads, head_features).transpose(0, 2, 1, 3)

    qh, kh, vh = split(q), split(k), split(v)
    sim = jnp.einsum("bhnd,bhmd->bhnm", qh, kh) * scale
    if causal:
        n, m = sim.shape[-2], sim.shape[-1]
        allowed = jnp.arange(m)[None, :] <= jnp.arange(n)[:, None] + (m - n)
        sim = jnp.where(allowed, sim, -jnp.finfo(jnp.float32).max)
    attn = jax.nn.softmax(sim.astype(jnp.float32), axis=-1)
    out = jnp.einsum("bhnm,bhmd->bhnd", attn, vh)
    out = out.transpose(0, 2, 1, 3).reshape(B, N, mid)
    return out @ params["w_out"] + params["b_out"]


if __name__ == "__main__":
    # Module config: Attention(features=32, head_features=8, num_heads=4,
    #                          out_features=32, causal=True)
    B, N, F = 2, 8, 32
    num_heads, head_features = 4, 8
    mid = num_heads * head_features        # 32
    out_features = 32
    causal = True

    key = jax.random.PRNGKey(0)
    ks = jax.random.split(key, 8)
    x = jax.random.normal(ks[0], (B, N, F), dtype=jnp.float32)

    params = {
        "ln_g": jnp.ones((F,), jnp.float32),
        "ln_b": jnp.zeros((F,), jnp.float32),
        "lnc_g": jnp.ones((F,), jnp.float32),
        "lnc_b": jnp.zeros((F,), jnp.float32),
        "w_q": 0.05 * jax.random.normal(ks[1], (F, mid), dtype=jnp.float32),
        "w_kv": 0.05 * jax.random.normal(ks[2], (F, 2 * mid), dtype=jnp.float32),
        "w_out": 0.05 * jax.random.normal(ks[3], (mid, out_features),
                                          dtype=jnp.float32),
        "b_out": 0.01 * jax.random.normal(ks[4], (out_features,),
                                          dtype=jnp.float32),
    }

    kparams = prepare_attention_params(params, num_heads=num_heads,
                                       head_features=head_features)

    out = attention_forward(x, kparams, num_heads=num_heads,
                            head_features=head_features, causal=causal)
    out = jax.block_until_ready(out)

    ref = attention_reference(x, params, num_heads=num_heads,
                              head_features=head_features, causal=causal)
    assert out.shape == (B, N, out_features)
    # tolerance leaves headroom for the approximate (EUP) softmax reciprocal
    assert jnp.max(jnp.abs(out - ref)) < 2e-3, "mismatch vs reference"

    print("KERNEL_OK")
</pallas_src>

<mosaic_0001>
module attributes {stable_mosaic.version = 11 : i64} {
  func.func @_fused_attention_kernel(%arg0: i32, %arg1: memref<1x8x32xf32, #tpu.memory_space<vmem>>, %arg2: memref<1x32xf32, #tpu.memory_space<vmem>>, %arg3: memref<1x32xf32, #tpu.memory_space<vmem>>, %arg4: memref<1x32xf32, #tpu.memory_space<vmem>>, %arg5: memref<1x32xf32, #tpu.memory_space<vmem>>, %arg6: memref<4x32x8xf32, #tpu.memory_space<vmem>>, %arg7: memref<4x32x8xf32, #tpu.memory_space<vmem>>, %arg8: memref<4x32x8xf32, #tpu.memory_space<vmem>>, %arg9: memref<4x8x32xf32, #tpu.memory_space<vmem>>, %arg10: memref<1x32xf32, #tpu.memory_space<vmem>>, %arg11: memref<1x8x32xf32, #tpu.memory_space<vmem>>) attributes {dimension_semantics = [#tpu.dimension_semantics<parallel>], iteration_bounds = array<i64: 2>, scalar_prefetch = 0 : i64, scratch_operands = 0 : i64, tpu.core_type = #tpu.core_type<tc>, window_params = [{transform_indices = @transform_0, window_bounds = array<i64: 1, 8, 32>}, {pipeline_mode = #tpu.pipeline_mode<synchronous>, transform_indices = @transform_1, window_bounds = array<i64: 1, 32>}, {pipeline_mode = #tpu.pipeline_mode<synchronous>, transform_indices = @transform_2, window_bounds = array<i64: 1, 32>}, {pipeline_mode = #tpu.pipeline_mode<synchronous>, transform_indices = @transform_3, window_bounds = array<i64: 1, 32>}, {pipeline_mode = #tpu.pipeline_mode<synchronous>, transform_indices = @transform_4, window_bounds = array<i64: 1, 32>}, {pipeline_mode = #tpu.pipeline_mode<synchronous>, transform_indices = @transform_5, window_bounds = array<i64: 4, 32, 8>}, {pipeline_mode = #tpu.pipeline_mode<synchronous>, transform_indices = @transform_6, window_bounds = array<i64: 4, 32, 8>}, {pipeline_mode = #tpu.pipeline_mode<synchronous>, transform_indices = @transform_7, window_bounds = array<i64: 4, 32, 8>}, {pipeline_mode = #tpu.pipeline_mode<synchronous>, transform_indices = @transform_8, window_bounds = array<i64: 4, 8, 32>}, {pipeline_mode = #tpu.pipeline_mode<synchronous>, transform_indices = @transform_9, window_bounds = array<i64: 1, 32>}, {transform_indices = @transform_10, window_bounds = array<i64: 1, 8, 32>}]} {
    %c0 = arith.constant 0 : index
    %c0_0 = arith.constant 0 : index
    %c0_1 = arith.constant 0 : index
    %0 = vector.load %arg1[%c0, %c0_0, %c0_1] : memref<1x8x32xf32, #tpu.memory_space<vmem>>, vector<1x8x32xf32>
    %1 = vector.shape_cast %0 : vector<1x8x32xf32> to vector<8x32xf32>
    %c0_2 = arith.constant 0 : index
    %c0_3 = arith.constant 0 : index
    %2 = vector.load %arg2[%c0_2, %c0_3] : memref<1x32xf32, #tpu.memory_space<vmem>>, vector<1x32xf32>
    %c0_4 = arith.constant 0 : index
    %c0_5 = arith.constant 0 : index
    %3 = vector.load %arg3[%c0_4, %c0_5] : memref<1x32xf32, #tpu.memory_space<vmem>>, vector<1x32xf32>
    %cst = arith.constant dense<0.000000e+00> : vector<8xf32>
    %4 = vector.multi_reduction <add>, %1, %cst [1] : vector<8x32xf32> to vector<8xf32>
    %5 = vector.shape_cast %4 : vector<8xf32> to vector<8x1xf32>
    %cst_6 = arith.constant 3.200000e+01 : f32
    %6 = vector.broadcast %cst_6 : f32 to vector<8x1xf32>
    %7 = arith.divf %5, %6 : vector<8x1xf32>
    %8 = vector.broadcast %7 : vector<8x1xf32> to vector<8x32xf32>
    %9 = arith.subf %1, %8 : vector<8x32xf32>
    %10 = arith.mulf %9, %9 : vector<8x32xf32>
    %cst_7 = arith.constant dense<0.000000e+00> : vector<8xf32>
    %11 = vector.multi_reduction <add>, %10, %cst_7 [1] : vector<8x32xf32> to vector<8xf32>
    %12 = vector.shape_cast %11 : vector<8xf32> to vector<8x1xf32>
    %cst_8 = arith.constant 3.200000e+01 : f32
    %13 = vector.broadcast %cst_8 : f32 to vector<8x1xf32>
    %14 = arith.divf %12, %13 : vector<8x1xf32>
    %15 = vector.broadcast %7 : vector<8x1xf32> to vector<8x32xf32>
    %16 = arith.subf %1, %15 : vector<8x32xf32>
    %cst_9 = arith.constant 9.99999974E-6 : f32
    %17 = vector.broadcast %cst_9 : f32 to vector<8x1xf32>
    %18 = arith.addf %14, %17 : vector<8x1xf32>
    %19 = math.rsqrt %18 : vector<8x1xf32>
    %20 = vector.broadcast %19 : vector<8x1xf32> to vector<8x32xf32>
    %21 = arith.mulf %16, %20 : vector<8x32xf32>
    %22 = vector.broadcast %2 : vector<1x32xf32> to vector<8x32xf32>
    %23 = arith.mulf %21, %22 : vector<8x32xf32>
    %24 = vector.broadcast %3 : vector<1x32xf32> to vector<8x32xf32>
    %25 = arith.addf %23, %24 : vector<8x32xf32>
    %c0_10 = arith.constant 0 : index
    %c0_11 = arith.constant 0 : index
    %26 = vector.load %arg4[%c0_10, %c0_11] : memref<1x32xf32, #tpu.memory_space<vmem>>, vector<1x32xf32>
    %c0_12 = arith.constant 0 : index
    %c0_13 = arith.constant 0 : index
    %27 = vector.load %arg5[%c0_12, %c0_13] : memref<1x32xf32, #tpu.memory_space<vmem>>, vector<1x32xf32>
    %cst_14 = arith.constant dense<0.000000e+00> : vector<8xf32>
    %28 = vector.multi_reduction <add>, %1, %cst_14 [1] : vector<8x32xf32> to vector<8xf32>
    %29 = vector.shape_cast %28 : vector<8xf32> to vector<8x1xf32>
    %cst_15 = arith.constant 3.200000e+01 : f32
    %30 = vector.broadcast %cst_15 : f32 to vector<8x1xf32>
    %31 = arith.divf %29, %30 : vector<8x1xf32>
    %32 = vector.broadcast %31 : vector<8x1xf32> to vector<8x32xf32>
    %33 = arith.subf %1, %32 : vector<8x32xf32>
    %34 = arith.mulf %33, %33 : vector<8x32xf32>
    %cst_16 = arith.constant dense<0.000000e+00> : vector<8xf32>
    %35 = vector.multi_reduction <add>, %34, %cst_16 [1] : vector<8x32xf32> to vector<8xf32>
    %36 = vector.shape_cast %35 : vector<8xf32> to vector<8x1xf32>
    %cst_17 = arith.constant 3.200000e+01 : f32
    %37 = vector.broadcast %cst_17 : f32 to vector<8x1xf32>
    %38 = arith.divf %36, %37 : vector<8x1xf32>
    %39 = vector.broadcast %31 : vector<8x1xf32> to vector<8x32xf32>
    %40 = arith.subf %1, %39 : vector<8x32xf32>
    %cst_18 = arith.constant 9.99999974E-6 : f32
    %41 = vector.broadcast %cst_18 : f32 to vector<8x1xf32>
    %42 = arith.addf %38, %41 : vector<8x1xf32>
    %43 = math.rsqrt %42 : vector<8x1xf32>
    %44 = vector.broadcast %43 : vector<8x1xf32> to vector<8x32xf32>
    %45 = arith.mulf %40, %44 : vector<8x32xf32>
    %46 = vector.broadcast %26 : vector<1x32xf32> to vector<8x32xf32>
    %47 = arith.mulf %45, %46 : vector<8x32xf32>
    %48 = vector.broadcast %27 : vector<1x32xf32> to vector<8x32xf32>
    %49 = arith.addf %47, %48 : vector<8x32xf32>
    %50 = vector.shape_cast %25 : vector<8x32xf32> to vector<1x8x32xf32>
    %51 = vector.broadcast %50 : vector<1x8x32xf32> to vector<4x8x32xf32>
    %52 = vector.shape_cast %49 : vector<8x32xf32> to vector<1x8x32xf32>
    %53 = vector.broadcast %52 : vector<1x8x32xf32> to vector<4x8x32xf32>
    %c0_19 = arith.constant 0 : index
    %c0_20 = arith.constant 0 : index
    %c0_21 = arith.constant 0 : index
    %54 = vector.load %arg6[%c0_19, %c0_20, %c0_21] : memref<4x32x8xf32, #tpu.memory_space<vmem>>, vector<4x32x8xf32>
    %cst_22 = arith.constant dense<0.000000e+00> : vector<4x8x8xf32>
    %55 = tpu.matmul %51, %54, %cst_22 {dimension_numbers = #tpu.dot_dimension_numbers<[2], [1], [1], [2], [0, 0, 0, 1, 1, 2], [0], [0]>} : vector<4x8x32xf32>, vector<4x32x8xf32>, vector<4x8x8xf32> -> vector<4x8x8xf32>
    %c0_23 = arith.constant 0 : index
    %c0_24 = arith.constant 0 : index
    %c0_25 = arith.constant 0 : index
    %56 = vector.load %arg7[%c0_23, %c0_24, %c0_25] : memref<4x32x8xf32, #tpu.memory_space<vmem>>, vector<4x32x8xf32>
    %cst_26 = arith.constant dense<0.000000e+00> : vector<4x8x8xf32>
    %57 = tpu.matmul %53, %56, %cst_26 {dimension_numbers = #tpu.dot_dimension_numbers<[2], [1], [1], [2], [0, 0, 0, 1, 1, 2], [0], [0]>} : vector<4x8x32xf32>, vector<4x32x8xf32>, vector<4x8x8xf32> -> vector<4x8x8xf32>
    %c0_27 = arith.constant 0 : index
    %c0_28 = arith.constant 0 : index
    %c0_29 = arith.constant 0 : index
    %58 = vector.load %arg8[%c0_27, %c0_28, %c0_29] : memref<4x32x8xf32, #tpu.memory_space<vmem>>, vector<4x32x8xf32>
    %cst_30 = arith.constant dense<0.000000e+00> : vector<4x8x8xf32>
    %59 = tpu.matmul %53, %58, %cst_30 {dimension_numbers = #tpu.dot_dimension_numbers<[2], [1], [1], [2], [0, 0, 0, 1, 1, 2], [0], [0]>} : vector<4x8x32xf32>, vector<4x32x8xf32>, vector<4x8x8xf32> -> vector<4x8x8xf32>
    %cst_31 = arith.constant 0.353553385 : f32
    %60 = vector.broadcast %cst_31 : f32 to vector<4x8x8xf32>
    %61 = arith.mulf %55, %60 : vector<4x8x8xf32>
    %cst_32 = arith.constant dense<0.000000e+00> : vector<4x8x8xf32>
    %62 = tpu.matmul %61, %57, %cst_32 {dimension_numbers = #tpu.dot_dimension_numbers<[2], [2], [1], [1], [0, 0, 0, 1, 1, 1], [0], [0]>} : vector<4x8x8xf32>, vector<4x8x8xf32>, vector<4x8x8xf32> -> vector<4x8x8xf32>
    %63 = tpu.iota {dimensions = array<i32: 1>} : vector<4x8x8xi32>
    %64 = tpu.iota {dimensions = array<i32: 2>} : vector<4x8x8xi32>
    %c0_i32 = arith.constant 0 : i32
    %65 = vector.broadcast %c0_i32 : i32 to vector<4x8x8xi32>
    %66 = arith.addi %63, %65 : vector<4x8x8xi32>
    %67 = arith.cmpi sle, %64, %66 : vector<4x8x8xi32>
    %cst_33 = arith.constant -3.40282347E+38 : f32
    %68 = vector.broadcast %cst_33 : f32 to vector<4x8x8xf32>
    %69 = arith.select %67, %62, %68 : vector<4x8x8xi1>, vector<4x8x8xf32>
    %cst_34 = arith.constant dense<0xFF800000> : vector<4x8xf32>
    %70 = vector.multi_reduction <maximumf>, %69, %cst_34 [2] : vector<4x8x8xf32> to vector<4x8xf32>
    %71 = vector.shape_cast %70 : vector<4x8xf32> to vector<4x8x1xf32>
    %72 = vector.broadcast %71 : vector<4x8x1xf32> to vector<4x8x8xf32>
    %73 = arith.subf %69, %72 : vector<4x8x8xf32>
    %74 = math.exp %73 : vector<4x8x8xf32>
    %cst_35 = arith.constant dense<0.000000e+00> : vector<4x8xf32>
    %75 = vector.multi_reduction <add>, %74, %cst_35 [2] : vector<4x8x8xf32> to vector<4x8xf32>
    %76 = vector.shape_cast %75 : vector<4x8xf32> to vector<4x8x1xf32>
    %77 = tpu.reciprocal %76 {approx = true} : vector<4x8x1xf32> -> vector<4x8x1xf32>
    %78 = vector.broadcast %77 : vector<4x8x1xf32> to vector<4x8x8xf32>
    %79 = arith.mulf %74, %78 : vector<4x8x8xf32>
    %cst_36 = arith.constant dense<0.000000e+00> : vector<4x8x8xf32>
    %80 = tpu.matmul %79, %59, %cst_36 {dimension_numbers = #tpu.dot_dimension_numbers<[2], [1], [1], [2], [0, 0, 0, 1, 1, 2], [0], [0]>} : vector<4x8x8xf32>, vector<4x8x8xf32>, vector<4x8x8xf32> -> vector<4x8x8xf32>
    %c0_37 = arith.constant 0 : index
    %c0_38 = arith.constant 0 : index
    %c0_39 = arith.constant 0 : index
    %81 = vector.load %arg9[%c0_37, %c0_38, %c0_39] : memref<4x8x32xf32, #tpu.memory_space<vmem>>, vector<4x8x32xf32>
    %cst_40 = arith.constant dense<0.000000e+00> : vector<4x8x32xf32>
    %82 = tpu.matmul %80, %81, %cst_40 {dimension_numbers = #tpu.dot_dimension_numbers<[2], [1], [1], [2], [0, 0, 0, 1, 1, 2], [0], [0]>} : vector<4x8x8xf32>, vector<4x8x32xf32>, vector<4x8x32xf32> -> vector<4x8x32xf32>
    %cst_41 = arith.constant dense<0.000000e+00> : vector<8x32xf32>
    %83 = vector.multi_reduction <add>, %82, %cst_41 [0] : vector<4x8x32xf32> to vector<8x32xf32>
    %c0_42 = arith.constant 0 : index
    %c0_43 = arith.constant 0 : index
    %84 = vector.load %arg10[%c0_42, %c0_43] : memref<1x32xf32, #tpu.memory_space<vmem>>, vector<1x32xf32>
    %85 = vector.broadcast %84 : vector<1x32xf32> to vector<8x32xf32>
    %86 = arith.addf %83, %85 : vector<8x32xf32>
    %c0_44 = arith.constant 0 : index
    %c0_45 = arith.constant 0 : index
    %c0_46 = arith.constant 0 : index
    %87 = vector.load %arg11[%c0_44, %c0_45, %c0_46] : memref<1x8x32xf32, #tpu.memory_space<vmem>>, vector<1x8x32xf32>
    %88 = vector.shape_cast %87 : vector<1x8x32xf32> to vector<8x32xf32>
    %89 = vector.shape_cast %86 : vector<8x32xf32> to vector<1x8x32xf32>
    tpu.vector_store %arg11[%c0_44, %c0_45, %c0_46], %89 {strides = array<i32>} : memref<1x8x32xf32, #tpu.memory_space<vmem>>, vector<1x8x32xf32>,
    return
  }
  func.func @transform_0(%arg0: i32) -> (i32, i32, i32) {
    %c0_i32 = arith.constant 0 : i32
    %c0_i32_0 = arith.constant 0 : i32
    %c0_i32_1 = arith.constant 0 : i32
    return %arg0, %c0_i32, %c0_i32_0 : i32, i32, i32
  }
  func.func @transform_1(%arg0: i32) -> (i32, i32) {
    %c0_i32 = arith.constant 0 : i32
    %c0_i32_0 = arith.constant 0 : i32
    %c0_i32_1 = arith.constant 0 : i32
    return %c0_i32, %c0_i32_0 : i32, i32
  }
  func.func @transform_2(%arg0: i32) -> (i32, i32) {
    %c0_i32 = arith.constant 0 : i32
    %c0_i32_0 = arith.constant 0 : i32
    %c0_i32_1 = arith.constant 0 : i32
    return %c0_i32, %c0_i32_0 : i32, i32
  }
  func.func @transform_3(%arg0: i32) -> (i32, i32) {
    %c0_i32 = arith.constant 0 : i32
    %c0_i32_0 = arith.constant 0 : i32
    %c0_i32_1 = arith.constant 0 : i32
    return %c0_i32, %c0_i32_0 : i32, i32
  }
  func.func @transform_4(%arg0: i32) -> (i32, i32) {
    %c0_i32 = arith.constant 0 : i32
    %c0_i32_0 = arith.constant 0 : i32
    %c0_i32_1 = arith.constant 0 : i32
    return %c0_i32, %c0_i32_0 : i32, i32
  }
  func.func @transform_5(%arg0: i32) -> (i32, i32, i32) {
    %c0_i32 = arith.constant 0 : i32
    %c0_i32_0 = arith.constant 0 : i32
    %c0_i32_1 = arith.constant 0 : i32
    %c0_i32_2 = arith.constant 0 : i32
    return %c0_i32, %c0_i32_0, %c0_i32_1 : i32, i32, i32
  }
  func.func @transform_6(%arg0: i32) -> (i32, i32, i32) {
    %c0_i32 = arith.constant 0 : i32
    %c0_i32_0 = arith.constant 0 : i32
    %c0_i32_1 = arith.constant 0 : i32
    %c0_i32_2 = arith.constant 0 : i32
    return %c0_i32, %c0_i32_0, %c0_i32_1 : i32, i32, i32
  }
  func.func @transform_7(%arg0: i32) -> (i32, i32, i32) {
    %c0_i32 = arith.constant 0 : i32
    %c0_i32_0 = arith.constant 0 : i32
    %c0_i32_1 = arith.constant 0 : i32
    %c0_i32_2 = arith.constant 0 : i32
    return %c0_i32, %c0_i32_0, %c0_i32_1 : i32, i32, i32
  }
  func.func @transform_8(%arg0: i32) -> (i32, i32, i32) {
    %c0_i32 = arith.constant 0 : i32
    %c0_i32_0 = arith.constant 0 : i32
    %c0_i32_1 = arith.constant 0 : i32
    %c0_i32_2 = arith.constant 0 : i32
    return %c0_i32, %c0_i32_0, %c0_i32_1 : i32, i32, i32
  }
  func.func @transform_9(%arg0: i32) -> (i32, i32) {
    %c0_i32 = arith.constant 0 : i32
    %c0_i32_0 = arith.constant 0 : i32
    %c0_i32_1 = arith.constant 0 : i32
    return %c0_i32, %c0_i32_0 : i32, i32
  }
  func.func @transform_10(%arg0: i32) -> (i32, i32, i32) {
    %c0_i32 = arith.constant 0 : i32
    %c0_i32_0 = arith.constant 0 : i32
    %c0_i32_1 = arith.constant 0 : i32
    return %arg0, %c0_i32, %c0_i32_0 : i32, i32, i32
  }
}

</mosaic_0001>

<llo_original>
// kernel: tpu_custom_call.1
$region0: #{tpu_custom_call.1}
  #allocation0 [shape = 'u32[]', space=smem, size = 0x4, offset = 0x4, fixed_abs, tag = 'smem constant byte address 0x4 - core index']
  #allocation1 [shape = 'u32[144,128]{1,0:T(1,128)}', space=vmem, size = 0x12000, scoped, tag = 'internal scratch']
  %s0 = inlined_call_operand.vmem [shape: f32[2,8,32], index: 0, kind: input, shape index: {}]
  %s1 = inlined_call_operand.vmem [shape: f32[1,32], index: 1, kind: input, shape index: {}]
  %s2 = inlined_call_operand.vmem [shape: f32[1,32], index: 2, kind: input, shape index: {}]
  %s3 = inlined_call_operand.vmem [shape: f32[1,32], index: 3, kind: input, shape index: {}]
  %s4 = inlined_call_operand.vmem [shape: f32[1,32], index: 4, kind: input, shape index: {}]
  %s5 = inlined_call_operand.vmem [shape: f32[4,32,8], index: 5, kind: input, shape index: {}]
  %s6 = inlined_call_operand.vmem [shape: f32[4,32,8], index: 6, kind: input, shape index: {}]
  %s7 = inlined_call_operand.vmem [shape: f32[4,32,8], index: 7, kind: input, shape index: {}]
  %s8 = inlined_call_operand.vmem [shape: f32[4,8,32], index: 8, kind: input, shape index: {}]
  %s9 = inlined_call_operand.vmem [shape: f32[1,32], index: 9, kind: input, shape index: {}]
  %s10 = inlined_call_operand.hbm [shape: f32[2,8,32], index: 10, kind: output, shape index: {}]
  %s11 = sld [smem:[#allocation0]]
  $region73: #{tpu_custom_call.1} parent=0
    _
  %s13 = ssub.s32 1, %s11
  %s14 = scalar_select 0, %s13, %s11
  $region1: #{tpu_custom_call.1} parent=0
    #allocation2 [shape = 'u8[8192]{0}', space=vmem, size = 0x2000, scoped, tag = 'output window, operand 0']
    #allocation3 [shape = 's32[2]{0}', space=sflag, size = 0x8, scoped, tag = 'scoped memory for tpu_custom_call.1']
    %15 = vsyncpa [#allocation3], 0
    %s16 = scalar_lea.sflag [#allocation3], 1
    %17 = vsyncpa %s16, 0
    loop: start=0, step=1, limit=4
    $region2: #{tpu_custom_call.1} parent=1 // loop_pre_header
      _
    $region3: #{tpu_custom_call.1} parent=1 // loop_header
      %s19 = sphi 0, %s23
      %p20 = scmp.ge.s32.totalorder %s19, 4
      %s29 = sphi 0, %s31
      %s32 = sphi 0, %s29
      %s33 = sphi 0, %s32
      %s49 = sphi 0, %s33
      %s53 = sphi 0, %s53
      %s55 = sphi 0, %s53
      %s56 = sphi 0, %s55
      %s70 = sphi 0, %s56
      %s74 = sphi 0, %s74
      %s76 = sphi 0, %s74
      %s77 = sphi 0, %s76
      %s91 = sphi 0, %s77
      %s95 = sphi 0, %s95
      %s97 = sphi 0, %s95
      %s98 = sphi 0, %s97
      %s112 = sphi 0, %s98
      %s116 = sphi 0, %s116
      %s118 = sphi 0, %s116
      %s119 = sphi 0, %s118
      %s133 = sphi 0, %s119
      %s137 = sphi 0, %s137
      %s139 = sphi 0, %s137
      %s140 = sphi 0, %s139
      %s154 = sphi 0, %s140
      %s158 = sphi 0, %s158
      %s160 = sphi 0, %s158
      %s161 = sphi 0, %s160
      %s175 = sphi 0, %s161
      %s179 = sphi 0, %s179
      %s181 = sphi 0, %s179
      %s182 = sphi 0, %s181
      %s196 = sphi 0, %s182
      %s200 = sphi 0, %s200
      %s202 = sphi 0, %s200
      %s203 = sphi 0, %s202
      %s217 = sphi 0, %s203
      %s221 = sphi 0, %s221
      %s223 = sphi 0, %s221
      %s224 = sphi 0, %s223
      %s238 = sphi 0, %s224
      %s244 = sphi 0, %s246
      %s247 = sphi 0, %s244
      %s248 = sphi 0, %s247
      %s264 = sphi 0, %s248
    $region4: #{tpu_custom_call.1} parent=1 // loop_header_branch
      %22 = sbr.rel (%p20) target = $region8
    $region5: #{tpu_custom_call.1} parent=1 // loop_body
      %s24 = ssub.s32 %s19, 1
      %s25 = ssub.s32 %s19, 2
      %s26 = sadd.s32 %s19, 1
      %s27 = ssub.s32 %s19, %s26
      %p28 = scmp.eq.s32.totalorder %s27, 0
      %s30 = sadd.s32 %s29, 1
      %s31 = scalar_select %p28, %s29, %s30
      %p34 = pneg %p28
      %p35 = scmp.eq.s32.totalorder %s19, 1
      %p36 = por %p34, %p35
      %p37 = scmp.ne.s32.totalorder %s29, %s32
      %p38 = scmp.eq.s32.totalorder %s19, 0
      %p39 = por %p37, %p38
      %p40 = scmp.ne.s32.totalorder %s29, %s32
      %p41 = scmp.eq.s32.totalorder %s24, 1
      %p42 = por %p40, %p41
      %p43 = scmp.ne.s32.totalorder %s32, %s33
      %p44 = scmp.eq.s32.totalorder %s24, 0
      %p45 = por %p43, %p44
      %p46 = scmp.ne.s32.totalorder %s32, %s33
      %p47 = scmp.eq.s32.totalorder %s25, 1
      %p48 = por %p46, %p47
      %p50 = scmp.ne.s32.totalorder %s33, %s49
      %p51 = scmp.eq.s32.totalorder %s25, 0
      %p52 = por %p50, %p51
      %s54 = sadd.s32 %s53, 1
      %p57 = scmp.eq.s32.totalorder %s19, 1
      %p58 = scmp.ne.s32.totalorder %s53, %s55
      %p59 = scmp.eq.s32.totalorder %s19, 0
      %p60 = por %p58, %p59
      %p61 = scmp.ne.s32.totalorder %s53, %s55
      %p62 = scmp.eq.s32.totalorder %s24, 1
      %p63 = por %p61, %p62
      %p64 = scmp.ne.s32.totalorder %s55, %s56
      %p65 = scmp.eq.s32.totalorder %s24, 0
      %p66 = por %p64, %p65
      %p67 = scmp.ne.s32.totalorder %s55, %s56
      %p68 = scmp.eq.s32.totalorder %s25, 1
      %p69 = por %p67, %p68
      %p71 = scmp.ne.s32.totalorder %s56, %s70
      %p72 = scmp.eq.s32.totalorder %s25, 0
      %p73 = por %p71, %p72
      %s75 = sadd.s32 %s74, 1
      %p78 = scmp.eq.s32.totalorder %s19, 1
      %p79 = scmp.ne.s32.totalorder %s74, %s76
      %p80 = scmp.eq.s32.totalorder %s19, 0
      %p81 = por %p79, %p80
      %p82 = scmp.ne.s32.totalorder %s74, %s76
      %p83 = scmp.eq.s32.totalorder %s24, 1
      %p84 = por %p82, %p83
      %p85 = scmp.ne.s32.totalorder %s76, %s77
      %p86 = scmp.eq.s32.totalorder %s24, 0
      %p87 = por %p85, %p86
      %p88 = scmp.ne.s32.totalorder %s76, %s77
      %p89 = scmp.eq.s32.totalorder %s25, 1
      %p90 = por %p88, %p89
      %p92 = scmp.ne.s32.totalorder %s77, %s91
      %p93 = scmp.eq.s32.totalorder %s25, 0
      %p94 = por %p92, %p93
      %s96 = sadd.s32 %s95, 1
      %p99 = scmp.eq.s32.totalorder %s19, 1
      %p100 = scmp.ne.s32.totalorder %s95, %s97
      %p101 = scmp.eq.s32.totalorder %s19, 0
      %p102 = por %p100, %p101
      %p103 = scmp.ne.s32.totalorder %s95, %s97
      %p104 = scmp.eq.s32.totalorder %s24, 1
      %p105 = por %p103, %p104
      %p106 = scmp.ne.s32.totalorder %s97, %s98
      %p107 = scmp.eq.s32.totalorder %s24, 0
      %p108 = por %p106, %p107
      %p109 = scmp.ne.s32.totalorder %s97, %s98
      %p110 = scmp.eq.s32.totalorder %s25, 1
      %p111 = por %p109, %p110
      %p113 = scmp.ne.s32.totalorder %s98, %s112
      %p114 = scmp.eq.s32.totalorder %s25, 0
      %p115 = por %p113, %p114
      %s117 = sadd.s32 %s116, 1
      %p120 = scmp.eq.s32.totalorder %s19, 1
      %p121 = scmp.ne.s32.totalorder %s116, %s118
      %p122 = scmp.eq.s32.totalorder %s19, 0
      %p123 = por %p121, %p122
      %p124 = scmp.ne.s32.totalorder %s116, %s118
      %p125 = scmp.eq.s32.totalorder %s24, 1
      %p126 = por %p124, %p125
      %p127 = scmp.ne.s32.totalorder %s118, %s119
      %p128 = scmp.eq.s32.totalorder %s24, 0
      %p129 = por %p127, %p128
      %p130 = scmp.ne.s32.totalorder %s118, %s119
      %p131 = scmp.eq.s32.totalorder %s25, 1
      %p132 = por %p130, %p131
      %p134 = scmp.ne.s32.totalorder %s119, %s133
      %p135 = scmp.eq.s32.totalorder %s25, 0
      %p136 = por %p134, %p135
      %s138 = sadd.s32 %s137, 1
      %p141 = scmp.eq.s32.totalorder %s19, 1
      %p142 = scmp.ne.s32.totalorder %s137, %s139
      %p143 = scmp.eq.s32.totalorder %s19, 0
      %p144 = por %p142, %p143
      %p145 = scmp.ne.s32.totalorder %s137, %s139
      %p146 = scmp.eq.s32.totalorder %s24, 1
      %p147 = por %p145, %p146
      %p148 = scmp.ne.s32.totalorder %s139, %s140
      %p149 = scmp.eq.s32.totalorder %s24, 0
      %p150 = por %p148, %p149
      %p151 = scmp.ne.s32.totalorder %s139, %s140
      %p152 = scmp.eq.s32.totalorder %s25, 1
      %p153 = por %p151, %p152
      %p155 = scmp.ne.s32.totalorder %s140, %s154
      %p156 = scmp.eq.s32.totalorder %s25, 0
      %p157 = por %p155, %p156
      %s159 = sadd.s32 %s158, 1
      %p162 = scmp.eq.s32.totalorder %s19, 1
      %p163 = scmp.ne.s32.totalorder %s158, %s160
      %p164 = scmp.eq.s32.totalorder %s19, 0
      %p165 = por %p163, %p164
      %p166 = scmp.ne.s32.totalorder %s158, %s160
      %p167 = scmp.eq.s32.totalorder %s24, 1
      %p168 = por %p166, %p167
      %p169 = scmp.ne.s32.totalorder %s160, %s161
      %p170 = scmp.eq.s32.totalorder %s24, 0
      %p171 = por %p169, %p170
      %p172 = scmp.ne.s32.totalorder %s160, %s161
      %p173 = scmp.eq.s32.totalorder %s25, 1
      %p174 = por %p172, %p173
      %p176 = scmp.ne.s32.totalorder %s161, %s175
      %p177 = scmp.eq.s32.totalorder %s25, 0
      %p178 = por %p176, %p177
      %s180 = sadd.s32 %s179, 1
      %p183 = scmp.eq.s32.totalorder %s19, 1
      %p184 = scmp.ne.s32.totalorder %s179, %s181
      %p185 = scmp.eq.s32.totalorder %s19, 0
      %p186 = por %p184, %p185
      %p187 = scmp.ne.s32.totalorder %s179, %s181
      %p188 = scmp.eq.s32.totalorder %s24, 1
      %p189 = por %p187, %p188
      %p190 = scmp.ne.s32.totalorder %s181, %s182
      %p191 = scmp.eq.s32.totalorder %s24, 0
      %p192 = por %p190, %p191
      %p193 = scmp.ne.s32.totalorder %s181, %s182
      %p194 = scmp.eq.s32.totalorder %s25, 1
      %p195 = por %p193, %p194
      %p197 = scmp.ne.s32.totalorder %s182, %s196
      %p198 = scmp.eq.s32.totalorder %s25, 0
      %p199 = por %p197, %p198
      %s201 = sadd.s32 %s200, 1
      %p204 = scmp.eq.s32.totalorder %s19, 1
      %p205 = scmp.ne.s32.totalorder %s200, %s202
      %p206 = scmp.eq.s32.totalorder %s19, 0
      %p207 = por %p205, %p206
      %p208 = scmp.ne.s32.totalorder %s200, %s202
      %p209 = scmp.eq.s32.totalorder %s24, 1
      %p210 = por %p208, %p209
      %p211 = scmp.ne.s32.totalorder %s202, %s203
      %p212 = scmp.eq.s32.totalorder %s24, 0
      %p213 = por %p211, %p212
      %p214 = scmp.ne.s32.totalorder %s202, %s203
      %p215 = scmp.eq.s32.totalorder %s25, 1
      %p216 = por %p214, %p215
      %p218 = scmp.ne.s32.totalorder %s203, %s217
      %p219 = scmp.eq.s32.totalorder %s25, 0
      %p220 = por %p218, %p219
      %s222 = sadd.s32 %s221, 1
      %p225 = scmp.eq.s32.totalorder %s19, 1
      %p226 = scmp.ne.s32.totalorder %s221, %s223
      %p227 = scmp.eq.s32.totalorder %s19, 0
      %p228 = por %p226, %p227
      %p229 = scmp.ne.s32.totalorder %s221, %s223
      %p230 = scmp.eq.s32.totalorder %s24, 1
      %p231 = por %p229, %p230
      %p232 = scmp.ne.s32.totalorder %s223, %s224
      %p233 = scmp.eq.s32.totalorder %s24, 0
      %p234 = por %p232, %p233
      %p235 = scmp.ne.s32.totalorder %s223, %s224
      %p236 = scmp.eq.s32.totalorder %s25, 1
      %p237 = por %p235, %p236
      %p239 = scmp.ne.s32.totalorder %s224, %s238
      %p240 = scmp.eq.s32.totalorder %s25, 0
      %p241 = por %p239, %p240
      %s242 = ssub.s32 %s19, %s26
      %p243 = scmp.eq.s32.totalorder %s242, 0
      %s245 = sadd.s32 %s244, 1
      %s246 = scalar_select %p243, %s244, %s245
      %p249 = pneg %p243
      %p250 = scmp.eq.s32.totalorder %s19, 1
      %p251 = por %p249, %p250
      %p252 = scmp.ne.s32.totalorder %s244, %s247
      %p253 = scmp.eq.s32.totalorder %s19, 0
      %p254 = por %p252, %p253
      %p255 = scmp.ne.s32.totalorder %s244, %s247
      %p256 = scmp.eq.s32.totalorder %s24, 1
      %p257 = por %p255, %p256
      %p258 = scmp.ne.s32.totalorder %s247, %s248
      %p259 = scmp.eq.s32.totalorder %s24, 0
      %p260 = por %p258, %p259
      %p261 = scmp.ne.s32.totalorder %s247, %s248
      %p262 = scmp.eq.s32.totalorder %s25, 1
      %p263 = por %p261, %p262
      %p265 = scmp.ne.s32.totalorder %s248, %s264
      %p266 = scmp.eq.s32.totalorder %s25, 0
      %p267 = por %p265, %p266
      %p268 = scmp.le.s32.totalorder 1, %s19
      %p269 = scmp.lt.s32.totalorder %s19, 3
      %p270 = pnand %p268, %p269
      %p271 = pneg %p270
      // Predicated region
      $region9: #{tpu_custom_call.1} parent=5 // pred_check
        _
      $region10: #{tpu_custom_call.1} parent=5 // pred_check_branch
        %273 = sbr.rel (%p270) target = $region12
      $region11: #{tpu_custom_call.1} parent=5 // pred_region
        %s274 = ssub.s32 %s19, 1
        // Predicated region
        $region13: #{tpu_custom_call.1} parent=11 // pred_check
          %p275 = pneg %p66
        $region14: #{tpu_custom_call.1} parent=11 // pred_check_branch
          %277 = sbr.rel (%p275) target = $region16
        $region15: #{tpu_custom_call.1} parent=11 // pred_region
          _
        $region16: #{tpu_custom_call.1} parent=11 // pred_fallthru
          _
        // Predicated region
        $region17: #{tpu_custom_call.1} parent=11 // pred_check
          %p278 = pneg %p87
        $region18: #{tpu_custom_call.1} parent=11 // pred_check_branch
          %280 = sbr.rel (%p278) target = $region20
        $region19: #{tpu_custom_call.1} parent=11 // pred_region
          _
        $region20: #{tpu_custom_call.1} parent=11 // pred_fallthru
          _
        // Predicated region
        $region21: #{tpu_custom_call.1} parent=11 // pred_check
          %p281 = pneg %p108
        $region22: #{tpu_custom_call.1} parent=11 // pred_check_branch
          %283 = sbr.rel (%p281) target = $region24
        $region23: #{tpu_custom_call.1} parent=11 // pred_region
          _
        $region24: #{tpu_custom_call.1} parent=11 // pred_fallthru
          _
        // Predicated region
        $region25: #{tpu_custom_call.1} parent=11 // pred_check
          %p284 = pneg %p129
        $region26: #{tpu_custom_call.1} parent=11 // pred_check_branch
          %286 = sbr.rel (%p284) target = $region28
        $region27: #{tpu_custom_call.1} parent=11 // pred_region
          _
        $region28: #{tpu_custom_call.1} parent=11 // pred_fallthru
          _
        // Predicated region
        $region29: #{tpu_custom_call.1} parent=11 // pred_check
          %p287 = pneg %p150
        $region30: #{tpu_custom_call.1} parent=11 // pred_check_branch
          %289 = sbr.rel (%p287) target = $region32
        $region31: #{tpu_custom_call.1} parent=11 // pred_region
          _
        $region32: #{tpu_custom_call.1} parent=11 // pred_fallthru
          _
        // Predicated region
        $region33: #{tpu_custom_call.1} parent=11 // pred_check
          %p290 = pneg %p171
        $region34: #{tpu_custom_call.1} parent=11 // pred_check_branch
          %292 = sbr.rel (%p290) target = $region36
        $region35: #{tpu_custom_call.1} parent=11 // pred_region
          _
        $region36: #{tpu_custom_call.1} parent=11 // pred_fallthru
          _
        // Predicated region
        $region37: #{tpu_custom_call.1} parent=11 // pred_check
          %p293 = pneg %p192
        $region38: #{tpu_custom_call.1} parent=11 // pred_check_branch
          %295 = sbr.rel (%p293) target = $region40
        $region39: #{tpu_custom_call.1} parent=11 // pred_region
          _
        $region40: #{tpu_custom_call.1} parent=11 // pred_fallthru
          _
        // Predicated region
        $region41: #{tpu_custom_call.1} parent=11 // pred_check
          %p296 = pneg %p213
        $region42: #{tpu_custom_call.1} parent=11 // pred_check_branch
          %298 = sbr.rel (%p296) target = $region44
        $region43: #{tpu_custom_call.1} parent=11 // pred_region
          _
        $region44: #{tpu_custom_call.1} parent=11 // pred_fallthru
          _
        // Predicated region
        $region45: #{tpu_custom_call.1} parent=11 // pred_check
          %p299 = pneg %p234
        $region46: #{tpu_custom_call.1} parent=11 // pred_check_branch
          %301 = sbr.rel (%p299) target = $region48
        $region47: #{tpu_custom_call.1} parent=11 // pred_region
          _
        $region48: #{tpu_custom_call.1} parent=11 // pred_fallthru
          _
      $region12: #{tpu_custom_call.1} parent=5 // pred_fallthru
        _
      %p302 = scmp.lt.s32.totalorder %s19, 2
      // Predicated region
      $region49: #{tpu_custom_call.1} parent=5 // pred_check
        %p303 = pneg %p302
      $region50: #{tpu_custom_call.1} parent=5 // pred_check_branch
        %305 = sbr.rel (%p303) target = $region52
      $region51: #{tpu_custom_call.1} parent=5 // pred_region
        // Predicated region
        $region53: #{tpu_custom_call.1} parent=51 // pred_check
          %p306 = pneg %p39
        $region54: #{tpu_custom_call.1} parent=51 // pred_check_branch
          %308 = sbr.rel (%p306) target = $region56
        $region55: #{tpu_custom_call.1} parent=51 // pred_region
          %p309 = scmp.lt.s32.totalorder %s19, 1
          %s310 = scalar_select %p309, %s19, 1
          %s311 = smul.addr %s310, 8
          %s312 = scalar_lea.vmem %s0, %s311
        $region56: #{tpu_custom_call.1} parent=51 // pred_fallthru
          _
      $region52: #{tpu_custom_call.1} parent=5 // pred_fallthru
        _
      %p313 = scmp.le.s32.totalorder 1, %s19
      %p314 = scmp.lt.s32.totalorder %s19, 3
      %p315 = pnand %p313, %p314
      %p316 = pneg %p315
      // Predicated region
      $region57: #{tpu_custom_call.1} parent=5 // pred_check
        _
      $region58: #{tpu_custom_call.1} parent=5 // pred_check_branch
        %318 = sbr.rel (%p315) target = $region60
      $region59: #{tpu_custom_call.1} parent=5 // pred_region
        %s319 = ssub.s32 %s19, 1
        %p320 = scmp.lt.s32.totalorder %s24, 1
        %s321 = scalar_select %p320, %s24, 1
        %s322 = smul.addr %s321, 8
        %s323 = scalar_lea.vmem %s0, %s322
        %p324 = pneg %p45
        %p325 = pneg %p42
        %p326 = pneg %p66
        %p327 = pneg %p63
        %p328 = pneg %p87
        %p329 = pneg %p84
        %p330 = pneg %p108
        %p331 = pneg %p105
        %p332 = pneg %p129
        %p333 = pneg %p126
        %p334 = pneg %p150
        %p335 = pneg %p147
        %p336 = pneg %p171
        %p337 = pneg %p168
        %p338 = pneg %p192
        %p339 = pneg %p189
        %p340 = pneg %p213
        %p341 = pneg %p210
        %p342 = pneg %p234
        %p343 = pneg %p231
        %p344 = pneg %p260
        %p345 = pneg %p257
        %s346 = sand.u32 %s247, 1
        %s347 = scalar_lea.sflag [#allocation3], %s346
        %s348 = sand.u32 %s247, 1
        %s349 = smul.addr %s348, 8
        %s350 = scalar_lea.vmem [#allocation2], %s349
        %p351 = scmp.lt.s32.totalorder %s24, 1
        %s352 = scalar_select %p351, %s24, 1
        %s353 = smul.addr %s352, 8
        %s354 = scalar_lea.vmem %s0, %s353
        %v355 = vld [vmem:[%s354] sm:$0xff]
        %v356 = vld [vmem:[%s1] sm:$0x1]
        %v357 = vld [vmem:[%s2] sm:$0x1]
        %vm358 = vcmask 261120
        %v359 = vsel %vm358, %v355, 0.0
        %360 = vadd.xlane.f32.xlu0 %v359
        %v361 = vpop.xlane.xlu0 %360
        %v362 = vrcp.pop 32.0
        %v363 = vmul.f32 %v361, %v362
        %v364 = vsub.f32 %v355, %v363
        %v365 = vmul.f32 %v364, %v364
        %v366 = vsel %vm358, %v365, 0.0
        %367 = vadd.xlane.f32.xlu0 %v366
        %v368 = vpop.xlane.xlu0 %367
        %v369 = vmul.f32 %v368, %v362
        %v370 = vadd.f32 %v369, 1e-05
        %v371 = vrsqrt.pop %v370
        %v372 = vmul.f32 %v364, %v371
        %v374 = vlaneseq
        %v375 = vshrl.u32 %v374, 7
        %v376 = vsub.s32 0, %v375
        %v377 = vrot.slane %v356, %v376
        %v379 = vmul.f32 %v372, %v377
        %v381 = vlaneseq
        %v382 = vshrl.u32 %v381, 7
        %v383 = vsub.s32 0, %v382
        %v384 = vrot.slane %v357, %v383
        %v386 = vadd.f32 %v379, %v384
        %v387 = vld [vmem:[%s3] sm:$0x1]
        %v388 = vld [vmem:[%s4] sm:$0x1]
        %v390 = vlaneseq
        %v391 = vshrl.u32 %v390, 7
        %v392 = vsub.s32 0, %v391
        %v393 = vrot.slane %v387, %v392
        %v395 = vmul.f32 %v372, %v393
        %v397 = vlaneseq
        %v398 = vshrl.u32 %v397, 7
        %v399 = vsub.s32 0, %v398
        %v400 = vrot.slane %v388, %v399
        %v402 = vadd.f32 %v395, %v400
        %v403 = vld [vmem:[%s5] sm:$0xff]
        %v404 = vld [vmem:[%s5 + $0x8] sm:$0xff]
        %v405 = vld [vmem:[%s5 + $0x10] sm:$0xff]
        %v406 = vld [vmem:[%s5 + $0x18] sm:$0xff]
        %v407 = vld [vmem:[%s5 + $0x20] sm:$0xff]
        %v408 = vld [vmem:[%s5 + $0x28] sm:$0xff]
        %v409 = vld [vmem:[%s5 + $0x30] sm:$0xff]
        %v410 = vld [vmem:[%s5 + $0x38] sm:$0xff]
        %v411 = vld [vmem:[%s5 + $0x40] sm:$0xff]
        %v412 = vld [vmem:[%s5 + $0x48] sm:$0xff]
        %v413 = vld [vmem:[%s5 + $0x50] sm:$0xff]
        %v414 = vld [vmem:[%s5 + $0x58] sm:$0xff]
        %v415 = vld [vmem:[%s5 + $0x60] sm:$0xff]
        %v416 = vld [vmem:[%s5 + $0x68] sm:$0xff]
        %v417 = vld [vmem:[%s5 + $0x70] sm:$0xff]
        %v418 = vld [vmem:[%s5 + $0x78] sm:$0xff]
        %v420 = vsel %vm358, %v386, 0
        %422 = vmatprep.subr.mxu0 0.0
        %423 = vmatpush1.msra.mxu0 %v403
        %424 = vmatprep.subr.mxu0 0.0
        %425 = vmatpush1.msra.mxu0 %v404
        %426 = vmatprep.subr.mxu0 0.0
        %427 = vmatpush1.msra.mxu0 %v405
        %428 = vmatprep.subr.mxu0 0.0
        %429 = vmatpush1.msra.mxu0 %v406
        %430 = vmatprep.subr.mxu0 0.0
        %431 = vmatpush1.msra.mxu0 0.0
        %432 = vmatprep.subr.mxu0 0.0
        %433 = vmatpush1.msra.mxu0 0.0
        %434 = vmatprep.subr.mxu0 0.0
        %435 = vmatpush1.msra.mxu0 0.0
        %436 = vmatprep.subr.mxu0 0.0
        %437 = vmatpush1.msra.mxu0 0.0
        %438 = vmatprep.subr.mxu0 0.0
        %439 = vmatpush1.msra.mxu0 0.0
        %440 = vmatprep.subr.mxu0 0.0
        %441 = vmatpush1.msra.mxu0 0.0
        %442 = vmatprep.subr.mxu0 0.0
        %443 = vmatpush1.msra.mxu0 0.0
        %444 = vmatprep.subr.mxu0 0.0
        %445 = vmatpush1.msra.mxu0 0.0
        %446 = vmatprep.subr.mxu0 0.0
        %447 = vmatpush1.msra.mxu0 0.0
        %448 = vmatprep.subr.mxu0 0.0
        %449 = vmatpush1.msra.mxu0 0.0
        %450 = vmatprep.subr.mxu0 0.0
        %451 = vmatpush1.msra.mxu0 0.0
        %452 = vmatprep.subr.mxu0 0.0
        %453 = vmatpush1.msra.mxu0 0.0
        %454 = vmatprep.subr.mxu0 0.0
        %455 = vmatpush1.msra.mxu0 0.0
        %456 = vmatprep.subr.mxu0 0.0
        %457 = vmatpush1.msra.mxu0 0.0
        %458 = vmatprep.subr.mxu0 0.0
        %459 = vmatpush1.msra.mxu0 0.0
        %460 = vmatprep.subr.mxu0 0.0
        %461 = vmatpush1.msra.mxu0 0.0
        %462 = vmatprep.subr.mxu0 0.0
        %463 = vmatpush1.msra.mxu0 0.0
        %464 = vmatprep.subr.mxu0 0.0
        %465 = vmatpush1.msra.mxu0 0.0
        %466 = vmatprep.subr.mxu0 0.0
        %467 = vmatpush1.msra.mxu0 0.0
        %468 = vmatprep.subr.mxu0 0.0
        %469 = vmatpush1.msra.mxu0 0.0
        %470 = vmatprep.subr.mxu0 0.0
        %471 = vmatpush1.msra.mxu0 0.0
        %472 = vmatprep.subr.mxu0 0.0
        %473 = vmatpush1.msra.mxu0 0.0
        %474 = vmatprep.subr.mxu0 0.0
        %475 = vmatpush1.msra.mxu0 0.0
        %476 = vmatprep.subr.mxu0 0.0
        %477 = vmatpush1.msra.mxu0 0.0
        %478 = vmatprep.subr.mxu0 0.0
        %479 = vmatpush1.msra.mxu0 0.0
        %480 = vmatprep.subr.mxu0 0.0
        %481 = vmatpush1.msra.mxu0 0.0
        %482 = vmatprep.subr.mxu0 0.0
        %483 = vmatpush1.msra.mxu0 0.0
        %484 = vmatprep.subr.mxu0 0.0
        %485 = vmatpush1.msra.mxu0 0.0
        %486 = vmatprep.mubr.f32.mxu0 0.0
        %487 = vmatmul.mubr.f32.gmra.mrb[0].mxu0 %v420
        %v488 = vpop.f32.mrb[0].mxu0
        %v489 = vadd.f32 0.0, %v488
        %v490 = vpop.f32.mrb[0].mxu0
        %491 = vdwg.mxu0
        %492 = vmatprep.subr.mxu0 0.0
        %493 = vmatpush1.msra.mxu0 %v407
        %494 = vmatprep.subr.mxu0 0.0
        %495 = vmatpush1.msra.mxu0 %v408
        %496 = vmatprep.subr.mxu0 0.0
        %497 = vmatpush1.msra.mxu0 %v409
        %498 = vmatprep.subr.mxu0 0.0
        %499 = vmatpush1.msra.mxu0 %v410
        %500 = vmatprep.subr.mxu0 0.0
        %501 = vmatpush1.msra.mxu0 0.0
        %502 = vmatprep.subr.mxu0 0.0
        %503 = vmatpush1.msra.mxu0 0.0
        %504 = vmatprep.subr.mxu0 0.0
        %505 = vmatpush1.msra.mxu0 0.0
        %506 = vmatprep.subr.mxu0 0.0
        %507 = vmatpush1.msra.mxu0 0.0
        %508 = vmatprep.subr.mxu0 0.0
        %509 = vmatpush1.msra.mxu0 0.0
        %510 = vmatprep.subr.mxu0 0.0
        %511 = vmatpush1.msra.mxu0 0.0
        %512 = vmatprep.subr.mxu0 0.0
        %513 = vmatpush1.msra.mxu0 0.0
        %514 = vmatprep.subr.mxu0 0.0
        %515 = vmatpush1.msra.mxu0 0.0
        %516 = vmatprep.subr.mxu0 0.0
        %517 = vmatpush1.msra.mxu0 0.0
        %518 = vmatprep.subr.mxu0 0.0
        %519 = vmatpush1.msra.mxu0 0.0
        %520 = vmatprep.subr.mxu0 0.0
        %521 = vmatpush1.msra.mxu0 0.0
        %522 = vmatprep.subr.mxu0 0.0
        %523 = vmatpush1.msra.mxu0 0.0
        %524 = vmatprep.subr.mxu0 0.0
        %525 = vmatpush1.msra.mxu0 0.0
        %526 = vmatprep.subr.mxu0 0.0
        %527 = vmatpush1.msra.mxu0 0.0
        %528 = vmatprep.subr.mxu0 0.0
        %529 = vmatpush1.msra.mxu0 0.0
        %530 = vmatprep.subr.mxu0 0.0
        %531 = vmatpush1.msra.mxu0 0.0
        %532 = vmatprep.subr.mxu0 0.0
        %533 = vmatpush1.msra.mxu0 0.0
        %534 = vmatprep.subr.mxu0 0.0
        %535 = vmatpush1.msra.mxu0 0.0
        %536 = vmatprep.subr.mxu0 0.0
        %537 = vmatpush1.msra.mxu0 0.0
        %538 = vmatprep.subr.mxu0 0.0
        %539 = vmatpush1.msra.mxu0 0.0
        %540 = vmatprep.subr.mxu0 0.0
        %541 = vmatpush1.msra.mxu0 0.0
        %542 = vmatprep.subr.mxu0 0.0
        %543 = vmatpush1.msra.mxu0 0.0
        %544 = vmatprep.subr.mxu0 0.0
        %545 = vmatpush1.msra.mxu0 0.0
        %546 = vmatprep.subr.mxu0 0.0
        %547 = vmatpush1.msra.mxu0 0.0
        %548 = vmatprep.subr.mxu0 0.0
        %549 = vmatpush1.msra.mxu0 0.0
        %550 = vmatprep.subr.mxu0 0.0
        %551 = vmatpush1.msra.mxu0 0.0
        %552 = vmatprep.subr.mxu0 0.0
        %553 = vmatpush1.msra.mxu0 0.0
        %554 = vmatprep.subr.mxu0 0.0
        %555 = vmatpush1.msra.mxu0 0.0
        %556 = vmatprep.mubr.f32.mxu0 0.0
        %557 = vmatmul.mubr.f32.gmra.mrb[0].mxu0 %v420
        %v558 = vpop.f32.mrb[0].mxu0
        %v559 = vadd.f32 0.0, %v558
        %v560 = vpop.f32.mrb[0].mxu0
        %561 = vdwg.mxu0
        %562 = vmatprep.subr.mxu0 0.0
        %563 = vmatpush1.msra.mxu0 %v411
        %564 = vmatprep.subr.mxu0 0.0
        %565 = vmatpush1.msra.mxu0 %v412
        %566 = vmatprep.subr.mxu0 0.0
        %567 = vmatpush1.msra.mxu0 %v413
        %568 = vmatprep.subr.mxu0 0.0
        %569 = vmatpush1.msra.mxu0 %v414
        %570 = vmatprep.subr.mxu0 0.0
        %571 = vmatpush1.msra.mxu0 0.0
        %572 = vmatprep.subr.mxu0 0.0
        %573 = vmatpush1.msra.mxu0 0.0
        %574 = vmatprep.subr.mxu0 0.0
        %575 = vmatpush1.msra.mxu0 0.0
        %576 = vmatprep.subr.mxu0 0.0
        %577 = vmatpush1.msra.mxu0 0.0
        %578 = vmatprep.subr.mxu0 0.0
        %579 = vmatpush1.msra.mxu0 0.0
        %580 = vmatprep.subr.mxu0 0.0
        %581 = vmatpush1.msra.mxu0 0.0
        %582 = vmatprep.subr.mxu0 0.0
        %583 = vmatpush1.msra.mxu0 0.0
        %584 = vmatprep.subr.mxu0 0.0
        %585 = vmatpush1.msra.mxu0 0.0
        %586 = vmatprep.subr.mxu0 0.0
        %587 = vmatpush1.msra.mxu0 0.0
        %588 = vmatprep.subr.mxu0 0.0
        %589 = vmatpush1.msra.mxu0 0.0
        %590 = vmatprep.subr.mxu0 0.0
        %591 = vmatpush1.msra.mxu0 0.0
        %592 = vmatprep.subr.mxu0 0.0
        %593 = vmatpush1.msra.mxu0 0.0
        %594 = vmatprep.subr.mxu0 0.0
        %595 = vmatpush1.msra.mxu0 0.0
        %596 = vmatprep.subr.mxu0 0.0
        %597 = vmatpush1.msra.mxu0 0.0
        %598 = vmatprep.subr.mxu0 0.0
        %599 = vmatpush1.msra.mxu0 0.0
        %600 = vmatprep.subr.mxu0 0.0
        %601 = vmatpush1.msra.mxu0 0.0
        %602 = vmatprep.subr.mxu0 0.0
        %603 = vmatpush1.msra.mxu0 0.0
        %604 = vmatprep.subr.mxu0 0.0
        %605 = vmatpush1.msra.mxu0 0.0
        %606 = vmatprep.subr.mxu0 0.0
        %607 = vmatpush1.msra.mxu0 0.0
        %608 = vmatprep.subr.mxu0 0.0
        %609 = vmatpush1.msra.mxu0 0.0
        %610 = vmatprep.subr.mxu0 0.0
        %611 = vmatpush1.msra.mxu0 0.0
        %612 = vmatprep.subr.mxu0 0.0
        %613 = vmatpush1.msra.mxu0 0.0
        %614 = vmatprep.subr.mxu0 0.0
        %615 = vmatpush1.msra.mxu0 0.0
        %616 = vmatprep.subr.mxu0 0.0
        %617 = vmatpush1.msra.mxu0 0.0
        %618 = vmatprep.subr.mxu0 0.0
        %619 = vmatpush1.msra.mxu0 0.0
        %620 = vmatprep.subr.mxu0 0.0
        %621 = vmatpush1.msra.mxu0 0.0
        %622 = vmatprep.subr.mxu0 0.0
        %623 = vmatpush1.msra.mxu0 0.0
        %624 = vmatprep.subr.mxu0 0.0
        %625 = vmatpush1.msra.mxu0 0.0
        %626 = vmatprep.mubr.f32.mxu0 0.0
        %627 = vmatmul.mubr.f32.gmra.mrb[0].mxu0 %v420
        %v628 = vpop.f32.mrb[0].mxu0
        %v629 = vadd.f32 0.0, %v628
        %v630 = vpop.f32.mrb[0].mxu0
        %631 = vdwg.mxu0
        %632 = vmatprep.subr.mxu0 0.0
        %633 = vmatpush1.msra.mxu0 %v415
        %634 = vmatprep.subr.mxu0 0.0
        %635 = vmatpush1.msra.mxu0 %v416
        %636 = vmatprep.subr.mxu0 0.0
        %637 = vmatpush1.msra.mxu0 %v417
        %638 = vmatprep.subr.mxu0 0.0
        %639 = vmatpush1.msra.mxu0 %v418
        %640 = vmatprep.subr.mxu0 0.0
        %641 = vmatpush1.msra.mxu0 0.0
        %642 = vmatprep.subr.mxu0 0.0
        %643 = vmatpush1.msra.mxu0 0.0
        %644 = vmatprep.subr.mxu0 0.0
        %645 = vmatpush1.msra.mxu0 0.0
        %646 = vmatprep.subr.mxu0 0.0
        %647 = vmatpush1.msra.mxu0 0.0
        %648 = vmatprep.subr.mxu0 0.0
        %649 = vmatpush1.msra.mxu0 0.0
        %650 = vmatprep.subr.mxu0 0.0
        %651 = vmatpush1.msra.mxu0 0.0
        %652 = vmatprep.subr.mxu0 0.0
        %653 = vmatpush1.msra.mxu0 0.0
        %654 = vmatprep.subr.mxu0 0.0
        %655 = vmatpush1.msra.mxu0 0.0
        %656 = vmatprep.subr.mxu0 0.0
        %657 = vmatpush1.msra.mxu0 0.0
        %658 = vmatprep.subr.mxu0 0.0
        %659 = vmatpush1.msra.mxu0 0.0
        %660 = vmatprep.subr.mxu0 0.0
        %661 = vmatpush1.msra.mxu0 0.0
        %662 = vmatprep.subr.mxu0 0.0
        %663 = vmatpush1.msra.mxu0 0.0
        %664 = vmatprep.subr.mxu0 0.0
        %665 = vmatpush1.msra.mxu0 0.0
        %666 = vmatprep.subr.mxu0 0.0
        %667 = vmatpush1.msra.mxu0 0.0
        %668 = vmatprep.subr.mxu0 0.0
        %669 = vmatpush1.msra.mxu0 0.0
        %670 = vmatprep.subr.mxu0 0.0
        %671 = vmatpush1.msra.mxu0 0.0
        %672 = vmatprep.subr.mxu0 0.0
        %673 = vmatpush1.msra.mxu0 0.0
        %674 = vmatprep.subr.mxu0 0.0
        %675 = vmatpush1.msra.mxu0 0.0
        %676 = vmatprep.subr.mxu0 0.0
        %677 = vmatpush1.msra.mxu0 0.0
        %678 = vmatprep.subr.mxu0 0.0
        %679 = vmatpush1.msra.mxu0 0.0
        %680 = vmatprep.subr.mxu0 0.0
        %681 = vmatpush1.msra.mxu0 0.0
        %682 = vmatprep.subr.mxu0 0.0
        %683 = vmatpush1.msra.mxu0 0.0
        %684 = vmatprep.subr.mxu0 0.0
        %685 = vmatpush1.msra.mxu0 0.0
        %686 = vmatprep.subr.mxu0 0.0
        %687 = vmatpush1.msra.mxu0 0.0
        %688 = vmatprep.subr.mxu0 0.0
        %689 = vmatpush1.msra.mxu0 0.0
        %690 = vmatprep.subr.mxu0 0.0
        %691 = vmatpush1.msra.mxu0 0.0
        %692 = vmatprep.subr.mxu0 0.0
        %693 = vmatpush1.msra.mxu0 0.0
        %694 = vmatprep.subr.mxu0 0.0
        %695 = vmatpush1.msra.mxu0 0.0
        %696 = vmatprep.mubr.f32.mxu0 0.0
        %697 = vmatmul.mubr.f32.gmra.mrb[0].mxu0 %v420
        %v698 = vpop.f32.mrb[0].mxu0
        %v699 = vadd.f32 0.0, %v698
        %v700 = vpop.f32.mrb[0].mxu0
        %701 = vdwg.mxu0
        %v702 = vld [vmem:[%s6] sm:$0xff]
        %v703 = vld [vmem:[%s6 + $0x8] sm:$0xff]
        %v704 = vld [vmem:[%s6 + $0x10] sm:$0xff]
        %v705 = vld [vmem:[%s6 + $0x18] sm:$0xff]
        %v706 = vld [vmem:[%s6 + $0x20] sm:$0xff]
        %v707 = vld [vmem:[%s6 + $0x28] sm:$0xff]
        %v708 = vld [vmem:[%s6 + $0x30] sm:$0xff]
        %v709 = vld [vmem:[%s6 + $0x38] sm:$0xff]
        %v710 = vld [vmem:[%s6 + $0x40] sm:$0xff]
        %v711 = vld [vmem:[%s6 + $0x48] sm:$0xff]
        %v712 = vld [vmem:[%s6 + $0x50] sm:$0xff]
        %v713 = vld [vmem:[%s6 + $0x58] sm:$0xff]
        %v714 = vld [vmem:[%s6 + $0x60] sm:$0xff]
        %v715 = vld [vmem:[%s6 + $0x68] sm:$0xff]
        %v716 = vld [vmem:[%s6 + $0x70] sm:$0xff]
        %v717 = vld [vmem:[%s6 + $0x78] sm:$0xff]
        %v719 = vsel %vm358, %v402, 0
        %721 = vmatprep.subr.mxu0 0.0
        %722 = vmatpush1.msra.mxu0 %v702
        %723 = vmatprep.subr.mxu0 0.0
        %724 = vmatpush1.msra.mxu0 %v703
        %725 = vmatprep.subr.mxu0 0.0
        %726 = vmatpush1.msra.mxu0 %v704
        %727 = vmatprep.subr.mxu0 0.0
        %728 = vmatpush1.msra.mxu0 %v705
        %729 = vmatprep.subr.mxu0 0.0
        %730 = vmatpush1.msra.mxu0 0.0
        %731 = vmatprep.subr.mxu0 0.0
        %732 = vmatpush1.msra.mxu0 0.0
        %733 = vmatprep.subr.mxu0 0.0
        %734 = vmatpush1.msra.mxu0 0.0
        %735 = vmatprep.subr.mxu0 0.0
        %736 = vmatpush1.msra.mxu0 0.0
        %737 = vmatprep.subr.mxu0 0.0
        %738 = vmatpush1.msra.mxu0 0.0
        %739 = vmatprep.subr.mxu0 0.0
        %740 = vmatpush1.msra.mxu0 0.0
        %741 = vmatprep.subr.mxu0 0.0
        %742 = vmatpush1.msra.mxu0 0.0
        %743 = vmatprep.subr.mxu0 0.0
        %744 = vmatpush1.msra.mxu0 0.0
        %745 = vmatprep.subr.mxu0 0.0
        %746 = vmatpush1.msra.mxu0 0.0
        %747 = vmatprep.subr.mxu0 0.0
        %748 = vmatpush1.msra.mxu0 0.0
        %749 = vmatprep.subr.mxu0 0.0
        %750 = vmatpush1.msra.mxu0 0.0
        %751 = vmatprep.subr.mxu0 0.0
        %752 = vmatpush1.msra.mxu0 0.0
        %753 = vmatprep.subr.mxu0 0.0
        %754 = vmatpush1.msra.mxu0 0.0
        %755 = vmatprep.subr.mxu0 0.0
        %756 = vmatpush1.msra.mxu0 0.0
        %757 = vmatprep.subr.mxu0 0.0
        %758 = vmatpush1.msra.mxu0 0.0
        %759 = vmatprep.subr.mxu0 0.0
        %760 = vmatpush1.msra.mxu0 0.0
        %761 = vmatprep.subr.mxu0 0.0
        %762 = vmatpush1.msra.mxu0 0.0
        %763 = vmatprep.subr.mxu0 0.0
        %764 = vmatpush1.msra.mxu0 0.0
        %765 = vmatprep.subr.mxu0 0.0
        %766 = vmatpush1.msra.mxu0 0.0
        %767 = vmatprep.subr.mxu0 0.0
        %768 = vmatpush1.msra.mxu0 0.0
        %769 = vmatprep.subr.mxu0 0.0
        %770 = vmatpush1.msra.mxu0 0.0
        %771 = vmatprep.subr.mxu0 0.0
        %772 = vmatpush1.msra.mxu0 0.0
        %773 = vmatprep.subr.mxu0 0.0
        %774 = vmatpush1.msra.mxu0 0.0
        %775 = vmatprep.subr.mxu0 0.0
        %776 = vmatpush1.msra.mxu0 0.0
        %777 = vmatprep.subr.mxu0 0.0
        %778 = vmatpush1.msra.mxu0 0.0
        %779 = vmatprep.subr.mxu0 0.0
        %780 = vmatpush1.msra.mxu0 0.0
        %781 = vmatprep.subr.mxu0 0.0
        %782 = vmatpush1.msra.mxu0 0.0
        %783 = vmatprep.subr.mxu0 0.0
        %784 = vmatpush1.msra.mxu0 0.0
        %785 = vmatprep.mubr.f32.mxu0 0.0
        %786 = vmatmul.mubr.f32.gmra.mrb[0].mxu0 %v719
        %v787 = vpop.f32.mrb[0].mxu0
        %v788 = vadd.f32 0.0, %v787
        %v789 = vpop.f32.mrb[0].mxu0
        %790 = vdwg.mxu0
        %791 = vmatprep.subr.mxu0 0.0
        %792 = vmatpush1.msra.mxu0 %v706
        %793 = vmatprep.subr.mxu0 0.0
        %794 = vmatpush1.msra.mxu0 %v707
        %795 = vmatprep.subr.mxu0 0.0
        %796 = vmatpush1.msra.mxu0 %v708
        %797 = vmatprep.subr.mxu0 0.0
        %798 = vmatpush1.msra.mxu0 %v709
        %799 = vmatprep.subr.mxu0 0.0
        %800 = vmatpush1.msra.mxu0 0.0
        %801 = vmatprep.subr.mxu0 0.0
        %802 = vmatpush1.msra.mxu0 0.0
        %803 = vmatprep.subr.mxu0 0.0
        %804 = vmatpush1.msra.mxu0 0.0
        %805 = vmatprep.subr.mxu0 0.0
        %806 = vmatpush1.msra.mxu0 0.0
        %807 = vmatprep.subr.mxu0 0.0
        %808 = vmatpush1.msra.mxu0 0.0
        %809 = vmatprep.subr.mxu0 0.0
        %810 = vmatpush1.msra.mxu0 0.0
        %811 = vmatprep.subr.mxu0 0.0
        %812 = vmatpush1.msra.mxu0 0.0
        %813 = vmatprep.subr.mxu0 0.0
        %814 = vmatpush1.msra.mxu0 0.0
        %815 = vmatprep.subr.mxu0 0.0
        %816 = vmatpush1.msra.mxu0 0.0
        %817 = vmatprep.subr.mxu0 0.0
        %818 = vmatpush1.msra.mxu0 0.0
        %819 = vmatprep.subr.mxu0 0.0
        %820 = vmatpush1.msra.mxu0 0.0
        %821 = vmatprep.subr.mxu0 0.0
        %822 = vmatpush1.msra.mxu0 0.0
        %823 = vmatprep.subr.mxu0 0.0
        %824 = vmatpush1.msra.mxu0 0.0
        %825 = vmatprep.subr.mxu0 0.0
        %826 = vmatpush1.msra.mxu0 0.0
        %827 = vmatprep.subr.mxu0 0.0
        %828 = vmatpush1.msra.mxu0 0.0
        %829 = vmatprep.subr.mxu0 0.0
        %830 = vmatpush1.msra.mxu0 0.0
        %831 = vmatprep.subr.mxu0 0.0
        %832 = vmatpush1.msra.mxu0 0.0
        %833 = vmatprep.subr.mxu0 0.0
        %834 = vmatpush1.msra.mxu0 0.0
        %835 = vmatprep.subr.mxu0 0.0
        %836 = vmatpush1.msra.mxu0 0.0
        %837 = vmatprep.subr.mxu0 0.0
        %838 = vmatpush1.msra.mxu0 0.0
        %839 = vmatprep.subr.mxu0 0.0
        %840 = vmatpush1.msra.mxu0 0.0
        %841 = vmatprep.subr.mxu0 0.0
        %842 = vmatpush1.msra.mxu0 0.0
        %843 = vmatprep.subr.mxu0 0.0
        %844 = vmatpush1.msra.mxu0 0.0
        %845 = vmatprep.subr.mxu0 0.0
        %846 = vmatpush1.msra.mxu0 0.0
        %847 = vmatprep.subr.mxu0 0.0
        %848 = vmatpush1.msra.mxu0 0.0
        %849 = vmatprep.subr.mxu0 0.0
        %850 = vmatpush1.msra.mxu0 0.0
        %851 = vmatprep.subr.mxu0 0.0
        %852 = vmatpush1.msra.mxu0 0.0
        %853 = vmatprep.subr.mxu0 0.0
        %854 = vmatpush1.msra.mxu0 0.0
        %855 = vmatprep.mubr.f32.mxu0 0.0
        %856 = vmatmul.mubr.f32.gmra.mrb[0].mxu0 %v719
        %v857 = vpop.f32.mrb[0].mxu0
        %v858 = vadd.f32 0.0, %v857
        %v859 = vpop.f32.mrb[0].mxu0
        %860 = vdwg.mxu0
        %861 = vmatprep.subr.mxu0 0.0
        %862 = vmatpush1.msra.mxu0 %v710
        %863 = vmatprep.subr.mxu0 0.0
        %864 = vmatpush1.msra.mxu0 %v711
        %865 = vmatprep.subr.mxu0 0.0
        %866 = vmatpush1.msra.mxu0 %v712
        %867 = vmatprep.subr.mxu0 0.0
        %868 = vmatpush1.msra.mxu0 %v713
        %869 = vmatprep.subr.mxu0 0.0
        %870 = vmatpush1.msra.mxu0 0.0
        %871 = vmatprep.subr.mxu0 0.0
        %872 = vmatpush1.msra.mxu0 0.0
        %873 = vmatprep.subr.mxu0 0.0
        %874 = vmatpush1.msra.mxu0 0.0
        %875 = vmatprep.subr.mxu0 0.0
        %876 = vmatpush1.msra.mxu0 0.0
        %877 = vmatprep.subr.mxu0 0.0
        %878 = vmatpush1.msra.mxu0 0.0
        %879 = vmatprep.subr.mxu0 0.0
        %880 = vmatpush1.msra.mxu0 0.0
        %881 = vmatprep.subr.mxu0 0.0
        %882 = vmatpush1.msra.mxu0 0.0
        %883 = vmatprep.subr.mxu0 0.0
        %884 = vmatpush1.msra.mxu0 0.0
        %885 = vmatprep.subr.mxu0 0.0
        %886 = vmatpush1.msra.mxu0 0.0
        %887 = vmatprep.subr.mxu0 0.0
        %888 = vmatpush1.msra.mxu0 0.0
        %889 = vmatprep.subr.mxu0 0.0
        %890 = vmatpush1.msra.mxu0 0.0
        %891 = vmatprep.subr.mxu0 0.0
        %892 = vmatpush1.msra.mxu0 0.0
        %893 = vmatprep.subr.mxu0 0.0
        %894 = vmatpush1.msra.mxu0 0.0
        %895 = vmatprep.subr.mxu0 0.0
        %896 = vmatpush1.msra.mxu0 0.0
        %897 = vmatprep.subr.mxu0 0.0
        %898 = vmatpush1.msra.mxu0 0.0
        %899 = vmatprep.subr.mxu0 0.0
        %900 = vmatpush1.msra.mxu0 0.0
        %901 = vmatprep.subr.mxu0 0.0
        %902 = vmatpush1.msra.mxu0 0.0
        %903 = vmatprep.subr.mxu0 0.0
        %904 = vmatpush1.msra.mxu0 0.0
        %905 = vmatprep.subr.mxu0 0.0
        %906 = vmatpush1.msra.mxu0 0.0
        %907 = vmatprep.subr.mxu0 0.0
        %908 = vmatpush1.msra.mxu0 0.0
        %909 = vmatprep.subr.mxu0 0.0
        %910 = vmatpush1.msra.mxu0 0.0
        %911 = vmatprep.subr.mxu0 0.0
        %912 = vmatpush1.msra.mxu0 0.0
        %913 = vmatprep.subr.mxu0 0.0
        %914 = vmatpush1.msra.mxu0 0.0
        %915 = vmatprep.subr.mxu0 0.0
        %916 = vmatpush1.msra.mxu0 0.0
        %917 = vmatprep.subr.mxu0 0.0
        %918 = vmatpush1.msra.mxu0 0.0
        %919 = vmatprep.subr.mxu0 0.0
        %920 = vmatpush1.msra.mxu0 0.0
        %921 = vmatprep.subr.mxu0 0.0
        %922 = vmatpush1.msra.mxu0 0.0
        %923 = vmatprep.subr.mxu0 0.0
        %924 = vmatpush1.msra.mxu0 0.0
        %925 = vmatprep.mubr.f32.mxu0 0.0
        %926 = vmatmul.mubr.f32.gmra.mrb[0].mxu0 %v719
        %v927 = vpop.f32.mrb[0].mxu0
        %v928 = vadd.f32 0.0, %v927
        %v929 = vpop.f32.mrb[0].mxu0
        %930 = vdwg.mxu0
        %931 = vmatprep.subr.mxu0 0.0
        %932 = vmatpush1.msra.mxu0 %v714
        %933 = vmatprep.subr.mxu0 0.0
        %934 = vmatpush1.msra.mxu0 %v715
        %935 = vmatprep.subr.mxu0 0.0
        %936 = vmatpush1.msra.mxu0 %v716
        %937 = vmatprep.subr.mxu0 0.0
        %938 = vmatpush1.msra.mxu0 %v717
        %939 = vmatprep.subr.mxu0 0.0
        %940 = vmatpush1.msra.mxu0 0.0
        %941 = vmatprep.subr.mxu0 0.0
        %942 = vmatpush1.msra.mxu0 0.0
        %943 = vmatprep.subr.mxu0 0.0
        %944 = vmatpush1.msra.mxu0 0.0
        %945 = vmatprep.subr.mxu0 0.0
        %946 = vmatpush1.msra.mxu0 0.0
        %947 = vmatprep.subr.mxu0 0.0
        %948 = vmatpush1.msra.mxu0 0.0
        %949 = vmatprep.subr.mxu0 0.0
        %950 = vmatpush1.msra.mxu0 0.0
        %951 = vmatprep.subr.mxu0 0.0
        %952 = vmatpush1.msra.mxu0 0.0
        %953 = vmatprep.subr.mxu0 0.0
        %954 = vmatpush1.msra.mxu0 0.0
        %955 = vmatprep.subr.mxu0 0.0
        %956 = vmatpush1.msra.mxu0 0.0
        %957 = vmatprep.subr.mxu0 0.0
        %958 = vmatpush1.msra.mxu0 0.0
        %959 = vmatprep.subr.mxu0 0.0
        %960 = vmatpush1.msra.mxu0 0.0
        %961 = vmatprep.subr.mxu0 0.0
        %962 = vmatpush1.msra.mxu0 0.0
        %963 = vmatprep.subr.mxu0 0.0
        %964 = vmatpush1.msra.mxu0 0.0
        %965 = vmatprep.subr.mxu0 0.0
        %966 = vmatpush1.msra.mxu0 0.0
        %967 = vmatprep.subr.mxu0 0.0
        %968 = vmatpush1.msra.mxu0 0.0
        %969 = vmatprep.subr.mxu0 0.0
        %970 = vmatpush1.msra.mxu0 0.0
        %971 = vmatprep.subr.mxu0 0.0
        %972 = vmatpush1.msra.mxu0 0.0
        %973 = vmatprep.subr.mxu0 0.0
        %974 = vmatpush1.msra.mxu0 0.0
        %975 = vmatprep.subr.mxu0 0.0
        %976 = vmatpush1.msra.mxu0 0.0
        %977 = vmatprep.subr.mxu0 0.0
        %978 = vmatpush1.msra.mxu0 0.0
        %979 = vmatprep.subr.mxu0 0.0
        %980 = vmatpush1.msra.mxu0 0.0
        %981 = vmatprep.subr.mxu0 0.0
        %982 = vmatpush1.msra.mxu0 0.0
        %983 = vmatprep.subr.mxu0 0.0
        %984 = vmatpush1.msra.mxu0 0.0
        %985 = vmatprep.subr.mxu0 0.0
        %986 = vmatpush1.msra.mxu0 0.0
        %987 = vmatprep.subr.mxu0 0.0
        %988 = vmatpush1.msra.mxu0 0.0
        %989 = vmatprep.subr.mxu0 0.0
        %990 = vmatpush1.msra.mxu0 0.0
        %991 = vmatprep.subr.mxu0 0.0
        %992 = vmatpush1.msra.mxu0 0.0
        %993 = vmatprep.subr.mxu0 0.0
        %994 = vmatpush1.msra.mxu0 0.0
        %995 = vmatprep.mubr.f32.mxu0 0.0
        %996 = vmatmul.mubr.f32.gmra.mrb[0].mxu0 %v719
        %v997 = vpop.f32.mrb[0].mxu0
        %v998 = vadd.f32 0.0, %v997
        %v999 = vpop.f32.mrb[0].mxu0
        %1000 = vdwg.mxu0
        %v1001 = vld [vmem:[%s7] sm:$0xff]
        %v1002 = vld [vmem:[%s7 + $0x8] sm:$0xff]
        %v1003 = vld [vmem:[%s7 + $0x10] sm:$0xff]
        %v1004 = vld [vmem:[%s7 + $0x18] sm:$0xff]
        %v1005 = vld [vmem:[%s7 + $0x20] sm:$0xff]
        %v1006 = vld [vmem:[%s7 + $0x28] sm:$0xff]
        %v1007 = vld [vmem:[%s7 + $0x30] sm:$0xff]
        %v1008 = vld [vmem:[%s7 + $0x38] sm:$0xff]
        %v1009 = vld [vmem:[%s7 + $0x40] sm:$0xff]
        %v1010 = vld [vmem:[%s7 + $0x48] sm:$0xff]
        %v1011 = vld [vmem:[%s7 + $0x50] sm:$0xff]
        %v1012 = vld [vmem:[%s7 + $0x58] sm:$0xff]
        %v1013 = vld [vmem:[%s7 + $0x60] sm:$0xff]
        %v1014 = vld [vmem:[%s7 + $0x68] sm:$0xff]
        %v1015 = vld [vmem:[%s7 + $0x70] sm:$0xff]
        %v1016 = vld [vmem:[%s7 + $0x78] sm:$0xff]
        %1017 = vmatprep.subr.mxu0 0.0
        %1018 = vmatpush1.msra.mxu0 %v1001
        %1019 = vmatprep.subr.mxu0 0.0
        %1020 = vmatpush1.msra.mxu0 %v1002
        %1021 = vmatprep.subr.mxu0 0.0
        %1022 = vmatpush1.msra.mxu0 %v1003
        %1023 = vmatprep.subr.mxu0 0.0
        %1024 = vmatpush1.msra.mxu0 %v1004
        %1025 = vmatprep.subr.mxu0 0.0
        %1026 = vmatpush1.msra.mxu0 0.0
        %1027 = vmatprep.subr.mxu0 0.0
        %1028 = vmatpush1.msra.mxu0 0.0
        %1029 = vmatprep.subr.mxu0 0.0
        %1030 = vmatpush1.msra.mxu0 0.0
        %1031 = vmatprep.subr.mxu0 0.0
        %1032 = vmatpush1.msra.mxu0 0.0
        %1033 = vmatprep.subr.mxu0 0.0
        %1034 = vmatpush1.msra.mxu0 0.0
        %1035 = vmatprep.subr.mxu0 0.0
        %1036 = vmatpush1.msra.mxu0 0.0
        %1037 = vmatprep.subr.mxu0 0.0
        %1038 = vmatpush1.msra.mxu0 0.0
        %1039 = vmatprep.subr.mxu0 0.0
        %1040 = vmatpush1.msra.mxu0 0.0
        %1041 = vmatprep.subr.mxu0 0.0
        %1042 = vmatpush1.msra.mxu0 0.0
        %1043 = vmatprep.subr.mxu0 0.0
        %1044 = vmatpush1.msra.mxu0 0.0
        %1045 = vmatprep.subr.mxu0 0.0
        %1046 = vmatpush1.msra.mxu0 0.0
        %1047 = vmatprep.subr.mxu0 0.0
        %1048 = vmatpush1.msra.mxu0 0.0
        %1049 = vmatprep.subr.mxu0 0.0
        %1050 = vmatpush1.msra.mxu0 0.0
        %1051 = vmatprep.subr.mxu0 0.0
        %1052 = vmatpush1.msra.mxu0 0.0
        %1053 = vmatprep.subr.mxu0 0.0
        %1054 = vmatpush1.msra.mxu0 0.0
        %1055 = vmatprep.subr.mxu0 0.0
        %1056 = vmatpush1.msra.mxu0 0.0
        %1057 = vmatprep.subr.mxu0 0.0
        %1058 = vmatpush1.msra.mxu0 0.0
        %1059 = vmatprep.subr.mxu0 0.0
        %1060 = vmatpush1.msra.mxu0 0.0
        %1061 = vmatprep.subr.mxu0 0.0
        %1062 = vmatpush1.msra.mxu0 0.0
        %1063 = vmatprep.subr.mxu0 0.0
        %1064 = vmatpush1.msra.mxu0 0.0
        %1065 = vmatprep.subr.mxu0 0.0
        %1066 = vmatpush1.msra.mxu0 0.0
        %1067 = vmatprep.subr.mxu0 0.0
        %1068 = vmatpush1.msra.mxu0 0.0
        %1069 = vmatprep.subr.mxu0 0.0
        %1070 = vmatpush1.msra.mxu0 0.0
        %1071 = vmatprep.subr.mxu0 0.0
        %1072 = vmatpush1.msra.mxu0 0.0
        %1073 = vmatprep.subr.mxu0 0.0
        %1074 = vmatpush1.msra.mxu0 0.0
        %1075 = vmatprep.subr.mxu0 0.0
        %1076 = vmatpush1.msra.mxu0 0.0
        %1077 = vmatprep.subr.mxu0 0.0
        %1078 = vmatpush1.msra.mxu0 0.0
        %1079 = vmatprep.subr.mxu0 0.0
        %1080 = vmatpush1.msra.mxu0 0.0
        %1081 = vmatprep.mubr.f32.mxu0 0.0
        %1082 = vmatmul.mubr.f32.gmra.mrb[0].mxu0 %v719
        %v1083 = vpop.f32.mrb[0].mxu0
        %v1084 = vadd.f32 0.0, %v1083
        %v1085 = vpop.f32.mrb[0].mxu0
        %1086 = vdwg.mxu0
        %1087 = vmatprep.subr.mxu0 0.0
        %1088 = vmatpush1.msra.mxu0 %v1005
        %1089 = vmatprep.subr.mxu0 0.0
        %1090 = vmatpush1.msra.mxu0 %v1006
        %1091 = vmatprep.subr.mxu0 0.0
        %1092 = vmatpush1.msra.mxu0 %v1007
        %1093 = vmatprep.subr.mxu0 0.0
        %1094 = vmatpush1.msra.mxu0 %v1008
        %1095 = vmatprep.subr.mxu0 0.0
        %1096 = vmatpush1.msra.mxu0 0.0
        %1097 = vmatprep.subr.mxu0 0.0
        %1098 = vmatpush1.msra.mxu0 0.0
        %1099 = vmatprep.subr.mxu0 0.0
        %1100 = vmatpush1.msra.mxu0 0.0
        %1101 = vmatprep.subr.mxu0 0.0
        %1102 = vmatpush1.msra.mxu0 0.0
        %1103 = vmatprep.subr.mxu0 0.0
        %1104 = vmatpush1.msra.mxu0 0.0
        %1105 = vmatprep.subr.mxu0 0.0
        %1106 = vmatpush1.msra.mxu0 0.0
        %1107 = vmatprep.subr.mxu0 0.0
        %1108 = vmatpush1.msra.mxu0 0.0
        %1109 = vmatprep.subr.mxu0 0.0
        %1110 = vmatpush1.msra.mxu0 0.0
        %1111 = vmatprep.subr.mxu0 0.0
        %1112 = vmatpush1.msra.mxu0 0.0
        %1113 = vmatprep.subr.mxu0 0.0
        %1114 = vmatpush1.msra.mxu0 0.0
        %1115 = vmatprep.subr.mxu0 0.0
        %1116 = vmatpush1.msra.mxu0 0.0
        %1117 = vmatprep.subr.mxu0 0.0
        %1118 = vmatpush1.msra.mxu0 0.0
        %1119 = vmatprep.subr.mxu0 0.0
        %1120 = vmatpush1.msra.mxu0 0.0
        %1121 = vmatprep.subr.mxu0 0.0
        %1122 = vmatpush1.msra.mxu0 0.0
        %1123 = vmatprep.subr.mxu0 0.0
        %1124 = vmatpush1.msra.mxu0 0.0
        %1125 = vmatprep.subr.mxu0 0.0
        %1126 = vmatpush1.msra.mxu0 0.0
        %1127 = vmatprep.subr.mxu0 0.0
        %1128 = vmatpush1.msra.mxu0 0.0
        %1129 = vmatprep.subr.mxu0 0.0
        %1130 = vmatpush1.msra.mxu0 0.0
        %1131 = vmatprep.subr.mxu0 0.0
        %1132 = vmatpush1.msra.mxu0 0.0
        %1133 = vmatprep.subr.mxu0 0.0
        %1134 = vmatpush1.msra.mxu0 0.0
        %1135 = vmatprep.subr.mxu0 0.0
        %1136 = vmatpush1.msra.mxu0 0.0
        %1137 = vmatprep.subr.mxu0 0.0
        %1138 = vmatpush1.msra.mxu0 0.0
        %1139 = vmatprep.subr.mxu0 0.0
        %1140 = vmatpush1.msra.mxu0 0.0
        %1141 = vmatprep.subr.mxu0 0.0
        %1142 = vmatpush1.msra.mxu0 0.0
        %1143 = vmatprep.subr.mxu0 0.0
        %1144 = vmatpush1.msra.mxu0 0.0
        %1145 = vmatprep.subr.mxu0 0.0
        %1146 = vmatpush1.msra.mxu0 0.0
        %1147 = vmatprep.subr.mxu0 0.0
        %1148 = vmatpush1.msra.mxu0 0.0
        %1149 = vmatprep.subr.mxu0 0.0
        %1150 = vmatpush1.msra.mxu0 0.0
        %1151 = vmatprep.mubr.f32.mxu0 0.0
        %1152 = vmatmul.mubr.f32.gmra.mrb[0].mxu0 %v719
        %v1153 = vpop.f32.mrb[0].mxu0
        %v1154 = vadd.f32 0.0, %v1153
        %v1155 = vpop.f32.mrb[0].mxu0
        %1156 = vdwg.mxu0
        %1157 = vmatprep.subr.mxu0 0.0
        %1158 = vmatpush1.msra.mxu0 %v1009
        %1159 = vmatprep.subr.mxu0 0.0
        %1160 = vmatpush1.msra.mxu0 %v1010
        %1161 = vmatprep.subr.mxu0 0.0
        %1162 = vmatpush1.msra.mxu0 %v1011
        %1163 = vmatprep.subr.mxu0 0.0
        %1164 = vmatpush1.msra.mxu0 %v1012
        %1165 = vmatprep.subr.mxu0 0.0
        %1166 = vmatpush1.msra.mxu0 0.0
        %1167 = vmatprep.subr.mxu0 0.0
        %1168 = vmatpush1.msra.mxu0 0.0
        %1169 = vmatprep.subr.mxu0 0.0
        %1170 = vmatpush1.msra.mxu0 0.0
        %1171 = vmatprep.subr.mxu0 0.0
        %1172 = vmatpush1.msra.mxu0 0.0
        %1173 = vmatprep.subr.mxu0 0.0
        %1174 = vmatpush1.msra.mxu0 0.0
        %1175 = vmatprep.subr.mxu0 0.0
        %1176 = vmatpush1.msra.mxu0 0.0
        %1177 = vmatprep.subr.mxu0 0.0
        %1178 = vmatpush1.msra.mxu0 0.0
        %1179 = vmatprep.subr.mxu0 0.0
        %1180 = vmatpush1.msra.mxu0 0.0
        %1181 = vmatprep.subr.mxu0 0.0
        %1182 = vmatpush1.msra.mxu0 0.0
        %1183 = vmatprep.subr.mxu0 0.0
        %1184 = vmatpush1.msra.mxu0 0.0
        %1185 = vmatprep.subr.mxu0 0.0
        %1186 = vmatpush1.msra.mxu0 0.0
        %1187 = vmatprep.subr.mxu0 0.0
        %1188 = vmatpush1.msra.mxu0 0.0
        %1189 = vmatprep.subr.mxu0 0.0
        %1190 = vmatpush1.msra.mxu0 0.0
        %1191 = vmatprep.subr.mxu0 0.0
        %1192 = vmatpush1.msra.mxu0 0.0
        %1193 = vmatprep.subr.mxu0 0.0
        %1194 = vmatpush1.msra.mxu0 0.0
        %1195 = vmatprep.subr.mxu0 0.0
        %1196 = vmatpush1.msra.mxu0 0.0
        %1197 = vmatprep.subr.mxu0 0.0
        %1198 = vmatpush1.msra.mxu0 0.0
        %1199 = vmatprep.subr.mxu0 0.0
        %1200 = vmatpush1.msra.mxu0 0.0
        %1201 = vmatprep.subr.mxu0 0.0
        %1202 = vmatpush1.msra.mxu0 0.0
        %1203 = vmatprep.subr.mxu0 0.0
        %1204 = vmatpush1.msra.mxu0 0.0
        %1205 = vmatprep.subr.mxu0 0.0
        %1206 = vmatpush1.msra.mxu0 0.0
        %1207 = vmatprep.subr.mxu0 0.0
        %1208 = vmatpush1.msra.mxu0 0.0
        %1209 = vmatprep.subr.mxu0 0.0
        %1210 = vmatpush1.msra.mxu0 0.0
        %1211 = vmatprep.subr.mxu0 0.0
        %1212 = vmatpush1.msra.mxu0 0.0
        %1213 = vmatprep.subr.mxu0 0.0
        %1214 = vmatpush1.msra.mxu0 0.0
        %1215 = vmatprep.subr.mxu0 0.0
        %1216 = vmatpush1.msra.mxu0 0.0
        %1217 = vmatprep.subr.mxu0 0.0
        %1218 = vmatpush1.msra.mxu0 0.0
        %1219 = vmatprep.subr.mxu0 0.0
        %1220 = vmatpush1.msra.mxu0 0.0
        %1221 = vmatprep.mubr.f32.mxu0 0.0
        %1222 = vmatmul.mubr.f32.gmra.mrb[0].mxu0 %v719
        %v1223 = vpop.f32.mrb[0].mxu0
        %v1224 = vadd.f32 0.0, %v1223
        %v1225 = vpop.f32.mrb[0].mxu0
        %1226 = vdwg.mxu0
        %1227 = vmatprep.subr.mxu0 0.0
        %1228 = vmatpush1.msra.mxu0 %v1013
        %1229 = vmatprep.subr.mxu0 0.0
        %1230 = vmatpush1.msra.mxu0 %v1014
        %1231 = vmatprep.subr.mxu0 0.0
        %1232 = vmatpush1.msra.mxu0 %v1015
        %1233 = vmatprep.subr.mxu0 0.0
        %1234 = vmatpush1.msra.mxu0 %v1016
        %1235 = vmatprep.subr.mxu0 0.0
        %1236 = vmatpush1.msra.mxu0 0.0
        %1237 = vmatprep.subr.mxu0 0.0
        %1238 = vmatpush1.msra.mxu0 0.0
        %1239 = vmatprep.subr.mxu0 0.0
        %1240 = vmatpush1.msra.mxu0 0.0
        %1241 = vmatprep.subr.mxu0 0.0
        %1242 = vmatpush1.msra.mxu0 0.0
        %1243 = vmatprep.subr.mxu0 0.0
        %1244 = vmatpush1.msra.mxu0 0.0
        %1245 = vmatprep.subr.mxu0 0.0
        %1246 = vmatpush1.msra.mxu0 0.0
        %1247 = vmatprep.subr.mxu0 0.0
        %1248 = vmatpush1.msra.mxu0 0.0
        %1249 = vmatprep.subr.mxu0 0.0
        %1250 = vmatpush1.msra.mxu0 0.0
        %1251 = vmatprep.subr.mxu0 0.0
        %1252 = vmatpush1.msra.mxu0 0.0
        %1253 = vmatprep.subr.mxu0 0.0
        %1254 = vmatpush1.msra.mxu0 0.0
        %1255 = vmatprep.subr.mxu0 0.0
        %1256 = vmatpush1.msra.mxu0 0.0
        %1257 = vmatprep.subr.mxu0 0.0
        %1258 = vmatpush1.msra.mxu0 0.0
        %1259 = vmatprep.subr.mxu0 0.0
        %1260 = vmatpush1.msra.mxu0 0.0
        %1261 = vmatprep.subr.mxu0 0.0
        %1262 = vmatpush1.msra.mxu0 0.0
        %1263 = vmatprep.subr.mxu0 0.0
        %1264 = vmatpush1.msra.mxu0 0.0
        %1265 = vmatprep.subr.mxu0 0.0
        %1266 = vmatpush1.msra.mxu0 0.0
        %1267 = vmatprep.subr.mxu0 0.0
        %1268 = vmatpush1.msra.mxu0 0.0
        %1269 = vmatprep.subr.mxu0 0.0
        %1270 = vmatpush1.msra.mxu0 0.0
        %1271 = vmatprep.subr.mxu0 0.0
        %1272 = vmatpush1.msra.mxu0 0.0
        %1273 = vmatprep.subr.mxu0 0.0
        %1274 = vmatpush1.msra.mxu0 0.0
        %1275 = vmatprep.subr.mxu0 0.0
        %1276 = vmatpush1.msra.mxu0 0.0
        %1277 = vmatprep.subr.mxu0 0.0
        %1278 = vmatpush1.msra.mxu0 0.0
        %1279 = vmatprep.subr.mxu0 0.0
        %1280 = vmatpush1.msra.mxu0 0.0
        %1281 = vmatprep.subr.mxu0 0.0
        %1282 = vmatpush1.msra.mxu0 0.0
        %1283 = vmatprep.subr.mxu0 0.0
        %1284 = vmatpush1.msra.mxu0 0.0
        %1285 = vmatprep.subr.mxu0 0.0
        %1286 = vmatpush1.msra.mxu0 0.0
        %1287 = vmatprep.subr.mxu0 0.0
        %1288 = vmatpush1.msra.mxu0 0.0
        %1289 = vmatprep.subr.mxu0 0.0
        %1290 = vmatpush1.msra.mxu0 0.0
        %1291 = vmatprep.mubr.f32.mxu0 0.0
        %1292 = vmatmul.mubr.f32.gmra.mrb[0].mxu0 %v719
        %v1293 = vpop.f32.mrb[0].mxu0
        %v1294 = vadd.f32 0.0, %v1293
        %v1295 = vpop.f32.mrb[0].mxu0
        %1296 = vdwg.mxu0
        %v1297 = vmul.f32 %v489, 0.35355338
        %v1298 = vmul.f32 %v559, 0.35355338
        %v1299 = vmul.f32 %v629, 0.35355338
        %v1300 = vmul.f32 %v699, 0.35355338
        %vm1301 = vcmask 64512
        %v1303 = vsel %vm1301, %v1297, 0
        %v1306 = vsel %vm1301, %v788, 0
        %1308 = vmatprep.subr.mxu0 0.0
        %1309 = vmatpush1.xpose.msra.mxu0 %v1306
        %1310 = vmatprep.subr.mxu0 0.0
        %1311 = vmatpush1.xpose.msra.mxu0 0.0
        %1312 = vmatprep.subr.mxu0 0.0
        %1313 = vmatpush1.xpose.msra.mxu0 0.0
        %1314 = vmatprep.subr.mxu0 0.0
        %1315 = vmatpush1.xpose.msra.mxu0 0.0
        %1316 = vmatprep.subr.mxu0 0.0
        %1317 = vmatpush1.xpose.msra.mxu0 0.0
        %1318 = vmatprep.subr.mxu0 0.0
        %1319 = vmatpush1.xpose.msra.mxu0 0.0
        %1320 = vmatprep.subr.mxu0 0.0
        %1321 = vmatpush1.xpose.msra.mxu0 0.0
        %1322 = vmatprep.subr.mxu0 0.0
        %1323 = vmatpush1.xpose.msra.mxu0 0.0
        %1324 = vmatprep.subr.mxu0 0.0
        %1325 = vmatpush1.xpose.msra.mxu0 0.0
        %1326 = vmatprep.subr.mxu0 0.0
        %1327 = vmatpush1.xpose.msra.mxu0 0.0
        %1328 = vmatprep.subr.mxu0 0.0
        %1329 = vmatpush1.xpose.msra.mxu0 0.0
        %1330 = vmatprep.subr.mxu0 0.0
        %1331 = vmatpush1.xpose.msra.mxu0 0.0
        %1332 = vmatprep.subr.mxu0 0.0
        %1333 = vmatpush1.xpose.msra.mxu0 0.0
        %1334 = vmatprep.subr.mxu0 0.0
        %1335 = vmatpush1.xpose.msra.mxu0 0.0
        %1336 = vmatprep.subr.mxu0 0.0
        %1337 = vmatpush1.xpose.msra.mxu0 0.0
        %1338 = vmatprep.subr.mxu0 0.0
        %1339 = vmatpush1.xpose.msra.mxu0 0.0
        %1340 = vmatprep.subr.mxu0 0.0
        %1341 = vmatpush1.xpose.msra.mxu0 0.0
        %1342 = vmatprep.subr.mxu0 0.0
        %1343 = vmatpush1.xpose.msra.mxu0 0.0
        %1344 = vmatprep.subr.mxu0 0.0
        %1345 = vmatpush1.xpose.msra.mxu0 0.0
        %1346 = vmatprep.subr.mxu0 0.0
        %1347 = vmatpush1.xpose.msra.mxu0 0.0
        %1348 = vmatprep.subr.mxu0 0.0
        %1349 = vmatpush1.xpose.msra.mxu0 0.0
        %1350 = vmatprep.subr.mxu0 0.0
        %1351 = vmatpush1.xpose.msra.mxu0 0.0
        %1352 = vmatprep.subr.mxu0 0.0
        %1353 = vmatpush1.xpose.msra.mxu0 0.0
        %1354 = vmatprep.subr.mxu0 0.0
        %1355 = vmatpush1.xpose.msra.mxu0 0.0
        %1356 = vmatprep.subr.mxu0 0.0
        %1357 = vmatpush1.xpose.msra.mxu0 0.0
        %1358 = vmatprep.subr.mxu0 0.0
        %1359 = vmatpush1.xpose.msra.mxu0 0.0
        %1360 = vmatprep.subr.mxu0 0.0
        %1361 = vmatpush1.xpose.msra.mxu0 0.0
        %1362 = vmatprep.subr.mxu0 0.0
        %1363 = vmatpush1.xpose.msra.mxu0 0.0
        %1364 = vmatprep.subr.mxu0 0.0
        %1365 = vmatpush1.xpose.msra.mxu0 0.0
        %1366 = vmatprep.subr.mxu0 0.0
        %1367 = vmatpush1.xpose.msra.mxu0 0.0
        %1368 = vmatprep.subr.mxu0 0.0
        %1369 = vmatpush1.xpose.msra.mxu0 0.0
        %1370 = vmatprep.subr.mxu0 0.0
        %1371 = vmatpush1.xpose.msra.mxu0 0.0
        %1372 = vmatprep.mubr.f32.mxu0 0.0
        %1373 = vmatmul.mubr.f32.gmra.mrb[0].mxu0 %v1303
        %v1374 = vpop.f32.mrb[0].mxu0
        %v1375 = vadd.f32 0.0, %v1374
        %v1376 = vpop.f32.mrb[0].mxu0
        %1377 = vdwg.mxu0
        %v1379 = vsel %vm1301, %v1298, 0
        %v1382 = vsel %vm1301, %v858, 0
        %1384 = vmatprep.subr.mxu0 0.0
        %1385 = vmatpush1.xpose.msra.mxu0 %v1382
        %1386 = vmatprep.subr.mxu0 0.0
        %1387 = vmatpush1.xpose.msra.mxu0 0.0
        %1388 = vmatprep.subr.mxu0 0.0
        %1389 = vmatpush1.xpose.msra.mxu0 0.0
        %1390 = vmatprep.subr.mxu0 0.0
        %1391 = vmatpush1.xpose.msra.mxu0 0.0
        %1392 = vmatprep.subr.mxu0 0.0
        %1393 = vmatpush1.xpose.msra.mxu0 0.0
        %1394 = vmatprep.subr.mxu0 0.0
        %1395 = vmatpush1.xpose.msra.mxu0 0.0
        %1396 = vmatprep.subr.mxu0 0.0
        %1397 = vmatpush1.xpose.msra.mxu0 0.0
        %1398 = vmatprep.subr.mxu0 0.0
        %1399 = vmatpush1.xpose.msra.mxu0 0.0
        %1400 = vmatprep.subr.mxu0 0.0
        %1401 = vmatpush1.xpose.msra.mxu0 0.0
        %1402 = vmatprep.subr.mxu0 0.0
        %1403 = vmatpush1.xpose.msra.mxu0 0.0
        %1404 = vmatprep.subr.mxu0 0.0
        %1405 = vmatpush1.xpose.msra.mxu0 0.0
        %1406 = vmatprep.subr.mxu0 0.0
        %1407 = vmatpush1.xpose.msra.mxu0 0.0
        %1408 = vmatprep.subr.mxu0 0.0
        %1409 = vmatpush1.xpose.msra.mxu0 0.0
        %1410 = vmatprep.subr.mxu0 0.0
        %1411 = vmatpush1.xpose.msra.mxu0 0.0
        %1412 = vmatprep.subr.mxu0 0.0
        %1413 = vmatpush1.xpose.msra.mxu0 0.0
        %1414 = vmatprep.subr.mxu0 0.0
        %1415 = vmatpush1.xpose.msra.mxu0 0.0
        %1416 = vmatprep.subr.mxu0 0.0
        %1417 = vmatpush1.xpose.msra.mxu0 0.0
        %1418 = vmatprep.subr.mxu0 0.0
        %1419 = vmatpush1.xpose.msra.mxu0 0.0
        %1420 = vmatprep.subr.mxu0 0.0
        %1421 = vmatpush1.xpose.msra.mxu0 0.0
        %1422 = vmatprep.subr.mxu0 0.0
        %1423 = vmatpush1.xpose.msra.mxu0 0.0
        %1424 = vmatprep.subr.mxu0 0.0
        %1425 = vmatpush1.xpose.msra.mxu0 0.0
        %1426 = vmatprep.subr.mxu0 0.0
        %1427 = vmatpush1.xpose.msra.mxu0 0.0
        %1428 = vmatprep.subr.mxu0 0.0
        %1429 = vmatpush1.xpose.msra.mxu0 0.0
        %1430 = vmatprep.subr.mxu0 0.0
        %1431 = vmatpush1.xpose.msra.mxu0 0.0
        %1432 = vmatprep.subr.mxu0 0.0
        %1433 = vmatpush1.xpose.msra.mxu0 0.0
        %1434 = vmatprep.subr.mxu0 0.0
        %1435 = vmatpush1.xpose.msra.mxu0 0.0
        %1436 = vmatprep.subr.mxu0 0.0
        %1437 = vmatpush1.xpose.msra.mxu0 0.0
        %1438 = vmatprep.subr.mxu0 0.0
        %1439 = vmatpush1.xpose.msra.mxu0 0.0
        %1440 = vmatprep.subr.mxu0 0.0
        %1441 = vmatpush1.xpose.msra.mxu0 0.0
        %1442 = vmatprep.subr.mxu0 0.0
        %1443 = vmatpush1.xpose.msra.mxu0 0.0
        %1444 = vmatprep.subr.mxu0 0.0
        %1445 = vmatpush1.xpose.msra.mxu0 0.0
        %1446 = vmatprep.subr.mxu0 0.0
        %1447 = vmatpush1.xpose.msra.mxu0 0.0
        %1448 = vmatprep.mubr.f32.mxu0 0.0
        %1449 = vmatmul.mubr.f32.gmra.mrb[0].mxu0 %v1379
        %v1450 = vpop.f32.mrb[0].mxu0
        %v1451 = vadd.f32 0.0, %v1450
        %v1452 = vpop.f32.mrb[0].mxu0
        %1453 = vdwg.mxu0
        %v1455 = vsel %vm1301, %v1299, 0
        %v1458 = vsel %vm1301, %v928, 0
        %1460 = vmatprep.subr.mxu0 0.0
        %1461 = vmatpush1.xpose.msra.mxu0 %v1458
        %1462 = vmatprep.subr.mxu0 0.0
        %1463 = vmatpush1.xpose.msra.mxu0 0.0
        %1464 = vmatprep.subr.mxu0 0.0
        %1465 = vmatpush1.xpose.msra.mxu0 0.0
        %1466 = vmatprep.subr.mxu0 0.0
        %1467 = vmatpush1.xpose.msra.mxu0 0.0
        %1468 = vmatprep.subr.mxu0 0.0
        %1469 = vmatpush1.xpose.msra.mxu0 0.0
        %1470 = vmatprep.subr.mxu0 0.0
        %1471 = vmatpush1.xpose.msra.mxu0 0.0
        %1472 = vmatprep.subr.mxu0 0.0
        %1473 = vmatpush1.xpose.msra.mxu0 0.0
        %1474 = vmatprep.subr.mxu0 0.0
        %1475 = vmatpush1.xpose.msra.mxu0 0.0
        %1476 = vmatprep.subr.mxu0 0.0
        %1477 = vmatpush1.xpose.msra.mxu0 0.0
        %1478 = vmatprep.subr.mxu0 0.0
        %1479 = vmatpush1.xpose.msra.mxu0 0.0
        %1480 = vmatprep.subr.mxu0 0.0
        %1481 = vmatpush1.xpose.msra.mxu0 0.0
        %1482 = vmatprep.subr.mxu0 0.0
        %1483 = vmatpush1.xpose.msra.mxu0 0.0
        %1484 = vmatprep.subr.mxu0 0.0
        %1485 = vmatpush1.xpose.msra.mxu0 0.0
        %1486 = vmatprep.subr.mxu0 0.0
        %1487 = vmatpush1.xpose.msra.mxu0 0.0
        %1488 = vmatprep.subr.mxu0 0.0
        %1489 = vmatpush1.xpose.msra.mxu0 0.0
        %1490 = vmatprep.subr.mxu0 0.0
        %1491 = vmatpush1.xpose.msra.mxu0 0.0
        %1492 = vmatprep.subr.mxu0 0.0
        %1493 = vmatpush1.xpose.msra.mxu0 0.0
        %1494 = vmatprep.subr.mxu0 0.0
        %1495 = vmatpush1.xpose.msra.mxu0 0.0
        %1496 = vmatprep.subr.mxu0 0.0
        %1497 = vmatpush1.xpose.msra.mxu0 0.0
        %1498 = vmatprep.subr.mxu0 0.0
        %1499 = vmatpush1.xpose.msra.mxu0 0.0
        %1500 = vmatprep.subr.mxu0 0.0
        %1501 = vmatpush1.xpose.msra.mxu0 0.0
        %1502 = vmatprep.subr.mxu0 0.0
        %1503 = vmatpush1.xpose.msra.mxu0 0.0
        %1504 = vmatprep.subr.mxu0 0.0
        %1505 = vmatpush1.xpose.msra.mxu0 0.0
        %1506 = vmatprep.subr.mxu0 0.0
        %1507 = vmatpush1.xpose.msra.mxu0 0.0
        %1508 = vmatprep.subr.mxu0 0.0
        %1509 = vmatpush1.xpose.msra.mxu0 0.0
        %1510 = vmatprep.subr.mxu0 0.0
        %1511 = vmatpush1.xpose.msra.mxu0 0.0
        %1512 = vmatprep.subr.mxu0 0.0
        %1513 = vmatpush1.xpose.msra.mxu0 0.0
        %1514 = vmatprep.subr.mxu0 0.0
        %1515 = vmatpush1.xpose.msra.mxu0 0.0
        %1516 = vmatprep.subr.mxu0 0.0
        %1517 = vmatpush1.xpose.msra.mxu0 0.0
        %1518 = vmatprep.subr.mxu0 0.0
        %1519 = vmatpush1.xpose.msra.mxu0 0.0
        %1520 = vmatprep.subr.mxu0 0.0
        %1521 = vmatpush1.xpose.msra.mxu0 0.0
        %1522 = vmatprep.subr.mxu0 0.0
        %1523 = vmatpush1.xpose.msra.mxu0 0.0
        %1524 = vmatprep.mubr.f32.mxu0 0.0
        %1525 = vmatmul.mubr.f32.gmra.mrb[0].mxu0 %v1455
        %v1526 = vpop.f32.mrb[0].mxu0
        %v1527 = vadd.f32 0.0, %v1526
        %v1528 = vpop.f32.mrb[0].mxu0
        %1529 = vdwg.mxu0
        %v1531 = vsel %vm1301, %v1300, 0
        %v1534 = vsel %vm1301, %v998, 0
        %1536 = vmatprep.subr.mxu0 0.0
        %1537 = vmatpush1.xpose.msra.mxu0 %v1534
        %1538 = vmatprep.subr.mxu0 0.0
        %1539 = vmatpush1.xpose.msra.mxu0 0.0
        %1540 = vmatprep.subr.mxu0 0.0
        %1541 = vmatpush1.xpose.msra.mxu0 0.0
        %1542 = vmatprep.subr.mxu0 0.0
        %1543 = vmatpush1.xpose.msra.mxu0 0.0
        %1544 = vmatprep.subr.mxu0 0.0
        %1545 = vmatpush1.xpose.msra.mxu0 0.0
        %1546 = vmatprep.subr.mxu0 0.0
        %1547 = vmatpush1.xpose.msra.mxu0 0.0
        %1548 = vmatprep.subr.mxu0 0.0
        %1549 = vmatpush1.xpose.msra.mxu0 0.0
        %1550 = vmatprep.subr.mxu0 0.0
        %1551 = vmatpush1.xpose.msra.mxu0 0.0
        %1552 = vmatprep.subr.mxu0 0.0
        %1553 = vmatpush1.xpose.msra.mxu0 0.0
        %1554 = vmatprep.subr.mxu0 0.0
        %1555 = vmatpush1.xpose.msra.mxu0 0.0
        %1556 = vmatprep.subr.mxu0 0.0
        %1557 = vmatpush1.xpose.msra.mxu0 0.0
        %1558 = vmatprep.subr.mxu0 0.0
        %1559 = vmatpush1.xpose.msra.mxu0 0.0
        %1560 = vmatprep.subr.mxu0 0.0
        %1561 = vmatpush1.xpose.msra.mxu0 0.0
        %1562 = vmatprep.subr.mxu0 0.0
        %1563 = vmatpush1.xpose.msra.mxu0 0.0
        %1564 = vmatprep.subr.mxu0 0.0
        %1565 = vmatpush1.xpose.msra.mxu0 0.0
        %1566 = vmatprep.subr.mxu0 0.0
        %1567 = vmatpush1.xpose.msra.mxu0 0.0
        %1568 = vmatprep.subr.mxu0 0.0
        %1569 = vmatpush1.xpose.msra.mxu0 0.0
        %1570 = vmatprep.subr.mxu0 0.0
        %1571 = vmatpush1.xpose.msra.mxu0 0.0
        %1572 = vmatprep.subr.mxu0 0.0
        %1573 = vmatpush1.xpose.msra.mxu0 0.0
        %1574 = vmatprep.subr.mxu0 0.0
        %1575 = vmatpush1.xpose.msra.mxu0 0.0
        %1576 = vmatprep.subr.mxu0 0.0
        %1577 = vmatpush1.xpose.msra.mxu0 0.0
        %1578 = vmatprep.subr.mxu0 0.0
        %1579 = vmatpush1.xpose.msra.mxu0 0.0
        %1580 = vmatprep.subr.mxu0 0.0
        %1581 = vmatpush1.xpose.msra.mxu0 0.0
        %1582 = vmatprep.subr.mxu0 0.0
        %1583 = vmatpush1.xpose.msra.mxu0 0.0
        %1584 = vmatprep.subr.mxu0 0.0
        %1585 = vmatpush1.xpose.msra.mxu0 0.0
        %1586 = vmatprep.subr.mxu0 0.0
        %1587 = vmatpush1.xpose.msra.mxu0 0.0
        %1588 = vmatprep.subr.mxu0 0.0
        %1589 = vmatpush1.xpose.msra.mxu0 0.0
        %1590 = vmatprep.subr.mxu0 0.0
        %1591 = vmatpush1.xpose.msra.mxu0 0.0
        %1592 = vmatprep.subr.mxu0 0.0
        %1593 = vmatpush1.xpose.msra.mxu0 0.0
        %1594 = vmatprep.subr.mxu0 0.0
        %1595 = vmatpush1.xpose.msra.mxu0 0.0
        %1596 = vmatprep.subr.mxu0 0.0
        %1597 = vmatpush1.xpose.msra.mxu0 0.0
        %1598 = vmatprep.subr.mxu0 0.0
        %1599 = vmatpush1.xpose.msra.mxu0 0.0
        %1600 = vmatprep.mubr.f32.mxu0 0.0
        %1601 = vmatmul.mubr.f32.gmra.mrb[0].mxu0 %v1531
        %v1602 = vpop.f32.mrb[0].mxu0
        %v1603 = vadd.f32 0.0, %v1602
        %v1604 = vpop.f32.mrb[0].mxu0
        %1605 = vdwg.mxu0
        %v1606 = vlaneseq
        %v1607 = vshrl.u32 %v1606, 7
        %v1608 = vlaneseq
        %v1609 = vand.u32 %v1608, 127
        %vm1610 = vcmp.le.s32.totalorder %v1609, %v1607
        %v1611 = vsel %vm1610, %v1375, -3.4028235e+38
        %v1612 = vsel %vm1610, %v1451, -3.4028235e+38
        %v1613 = vsel %vm1610, %v1527, -3.4028235e+38
        %v1614 = vsel %vm1610, %v1603, -3.4028235e+38
        %v1615 = vsel %vm1301, %v1611, -inf
        %1616 = vmax.xlane.f32.xlu0 %v1615
        %v1617 = vpop.xlane.xlu0 %1616
        %v1618 = vsel %vm1301, %v1612, -inf
        %1619 = vmax.xlane.f32.xlu0 %v1618
        %v1620 = vpop.xlane.xlu0 %1619
        %v1621 = vsel %vm1301, %v1613, -inf
        %1622 = vmax.xlane.f32.xlu0 %v1621
        %v1623 = vpop.xlane.xlu0 %1622
        %v1624 = vsel %vm1301, %v1614, -inf
        %1625 = vmax.xlane.f32.xlu0 %v1624
        %v1626 = vpop.xlane.xlu0 %1625
        %v1627 = vsub.f32 %v1611, %v1617
        %v1628 = vsub.f32 %v1612, %v1620
        %v1629 = vsub.f32 %v1613, %v1623
        %v1630 = vsub.f32 %v1614, %v1626
        %v1631 = vmul.f32 %v1627, 1.442695
        %v1632 = vpow.pop %v1631
        %v1633 = vmul.f32 %v1628, 1.442695
        %v1634 = vpow.pop %v1633
        %v1635 = vmul.f32 %v1629, 1.442695
        %v1636 = vpow.pop %v1635
        %v1637 = vmul.f32 %v1630, 1.442695
        %v1638 = vpow.pop %v1637
        %v1639 = vsel %vm1301, %v1632, 0.0
        %1640 = vadd.xlane.f32.xlu0 %v1639
        %v1641 = vpop.xlane.xlu0 %1640
        %v1642 = vsel %vm1301, %v1634, 0.0
        %1643 = vadd.xlane.f32.xlu0 %v1642
        %v1644 = vpop.xlane.xlu0 %1643
        %v1645 = vsel %vm1301, %v1636, 0.0
        %1646 = vadd.xlane.f32.xlu0 %v1645
        %v1647 = vpop.xlane.xlu0 %1646
        %v1648 = vsel %vm1301, %v1638, 0.0
        %1649 = vadd.xlane.f32.xlu0 %v1648
        %v1650 = vpop.xlane.xlu0 %1649
        %v1651 = vrcp.pop %v1641
        %v1652 = vrcp.pop %v1644
        %v1653 = vrcp.pop %v1647
        %v1654 = vrcp.pop %v1650
        %v1655 = vmul.f32 %v1632, %v1651
        %v1656 = vmul.f32 %v1634, %v1652
        %v1657 = vmul.f32 %v1636, %v1653
        %v1658 = vmul.f32 %v1638, %v1654
        %v1660 = vsel %vm1301, %v1655, 0
        %1662 = vmatprep.subr.mxu0 0.0
        %1663 = vmatpush1.msra.mxu0 %v1084
        %1664 = vmatprep.subr.mxu0 0.0
        %1665 = vmatpush1.msra.mxu0 0.0
        %1666 = vmatprep.subr.mxu0 0.0
        %1667 = vmatpush1.msra.mxu0 0.0
        %1668 = vmatprep.subr.mxu0 0.0
        %1669 = vmatpush1.msra.mxu0 0.0
        %1670 = vmatprep.subr.mxu0 0.0
        %1671 = vmatpush1.msra.mxu0 0.0
        %1672 = vmatprep.subr.mxu0 0.0
        %1673 = vmatpush1.msra.mxu0 0.0
        %1674 = vmatprep.subr.mxu0 0.0
        %1675 = vmatpush1.msra.mxu0 0.0
        %1676 = vmatprep.subr.mxu0 0.0
        %1677 = vmatpush1.msra.mxu0 0.0
        %1678 = vmatprep.subr.mxu0 0.0
        %1679 = vmatpush1.msra.mxu0 0.0
        %1680 = vmatprep.subr.mxu0 0.0
        %1681 = vmatpush1.msra.mxu0 0.0
        %1682 = vmatprep.subr.mxu0 0.0
        %1683 = vmatpush1.msra.mxu0 0.0
        %1684 = vmatprep.subr.mxu0 0.0
        %1685 = vmatpush1.msra.mxu0 0.0
        %1686 = vmatprep.subr.mxu0 0.0
        %1687 = vmatpush1.msra.mxu0 0.0
        %1688 = vmatprep.subr.mxu0 0.0
        %1689 = vmatpush1.msra.mxu0 0.0
        %1690 = vmatprep.subr.mxu0 0.0
        %1691 = vmatpush1.msra.mxu0 0.0
        %1692 = vmatprep.subr.mxu0 0.0
        %1693 = vmatpush1.msra.mxu0 0.0
        %1694 = vmatprep.subr.mxu0 0.0
        %1695 = vmatpush1.msra.mxu0 0.0
        %1696 = vmatprep.subr.mxu0 0.0
        %1697 = vmatpush1.msra.mxu0 0.0
        %1698 = vmatprep.subr.mxu0 0.0
        %1699 = vmatpush1.msra.mxu0 0.0
        %1700 = vmatprep.subr.mxu0 0.0
        %1701 = vmatpush1.msra.mxu0 0.0
        %1702 = vmatprep.subr.mxu0 0.0
        %1703 = vmatpush1.msra.mxu0 0.0
        %1704 = vmatprep.subr.mxu0 0.0
        %1705 = vmatpush1.msra.mxu0 0.0
        %1706 = vmatprep.subr.mxu0 0.0
        %1707 = vmatpush1.msra.mxu0 0.0
        %1708 = vmatprep.subr.mxu0 0.0
        %1709 = vmatpush1.msra.mxu0 0.0
        %1710 = vmatprep.subr.mxu0 0.0
        %1711 = vmatpush1.msra.mxu0 0.0
        %1712 = vmatprep.subr.mxu0 0.0
        %1713 = vmatpush1.msra.mxu0 0.0
        %1714 = vmatprep.subr.mxu0 0.0
        %1715 = vmatpush1.msra.mxu0 0.0
        %1716 = vmatprep.subr.mxu0 0.0
        %1717 = vmatpush1.msra.mxu0 0.0
        %1718 = vmatprep.subr.mxu0 0.0
        %1719 = vmatpush1.msra.mxu0 0.0
        %1720 = vmatprep.subr.mxu0 0.0
        %1721 = vmatpush1.msra.mxu0 0.0
        %1722 = vmatprep.subr.mxu0 0.0
        %1723 = vmatpush1.msra.mxu0 0.0
        %1724 = vmatprep.subr.mxu0 0.0
        %1725 = vmatpush1.msra.mxu0 0.0
        %1726 = vmatprep.mubr.f32.mxu0 0.0
        %1727 = vmatmul.mubr.f32.gmra.mrb[0].mxu0 %v1660
        %v1728 = vpop.f32.mrb[0].mxu0
        %v1729 = vadd.f32 0.0, %v1728
        %v1730 = vpop.f32.mrb[0].mxu0
        %1731 = vdwg.mxu0
        %v1733 = vsel %vm1301, %v1656, 0
        %1735 = vmatprep.subr.mxu0 0.0
        %1736 = vmatpush1.msra.mxu0 %v1154
        %1737 = vmatprep.subr.mxu0 0.0
        %1738 = vmatpush1.msra.mxu0 0.0
        %1739 = vmatprep.subr.mxu0 0.0
        %1740 = vmatpush1.msra.mxu0 0.0
        %1741 = vmatprep.subr.mxu0 0.0
        %1742 = vmatpush1.msra.mxu0 0.0
        %1743 = vmatprep.subr.mxu0 0.0
        %1744 = vmatpush1.msra.mxu0 0.0
        %1745 = vmatprep.subr.mxu0 0.0
        %1746 = vmatpush1.msra.mxu0 0.0
        %1747 = vmatprep.subr.mxu0 0.0
        %1748 = vmatpush1.msra.mxu0 0.0
        %1749 = vmatprep.subr.mxu0 0.0
        %1750 = vmatpush1.msra.mxu0 0.0
        %1751 = vmatprep.subr.mxu0 0.0
        %1752 = vmatpush1.msra.mxu0 0.0
        %1753 = vmatprep.subr.mxu0 0.0
        %1754 = vmatpush1.msra.mxu0 0.0
        %1755 = vmatprep.subr.mxu0 0.0
        %1756 = vmatpush1.msra.mxu0 0.0
        %1757 = vmatprep.subr.mxu0 0.0
        %1758 = vmatpush1.msra.mxu0 0.0
        %1759 = vmatprep.subr.mxu0 0.0
        %1760 = vmatpush1.msra.mxu0 0.0
        %1761 = vmatprep.subr.mxu0 0.0
        %1762 = vmatpush1.msra.mxu0 0.0
        %1763 = vmatprep.subr.mxu0 0.0
        %1764 = vmatpush1.msra.mxu0 0.0
        %1765 = vmatprep.subr.mxu0 0.0
        %1766 = vmatpush1.msra.mxu0 0.0
        %1767 = vmatprep.subr.mxu0 0.0
        %1768 = vmatpush1.msra.mxu0 0.0
        %1769 = vmatprep.subr.mxu0 0.0
        %1770 = vmatpush1.msra.mxu0 0.0
        %1771 = vmatprep.subr.mxu0 0.0
        %1772 = vmatpush1.msra.mxu0 0.0
        %1773 = vmatprep.subr.mxu0 0.0
        %1774 = vmatpush1.msra.mxu0 0.0
        %1775 = vmatprep.subr.mxu0 0.0
        %1776 = vmatpush1.msra.mxu0 0.0
        %1777 = vmatprep.subr.mxu0 0.0
        %1778 = vmatpush1.msra.mxu0 0.0
        %1779 = vmatprep.subr.mxu0 0.0
        %1780 = vmatpush1.msra.mxu0 0.0
        %1781 = vmatprep.subr.mxu0 0.0
        %1782 = vmatpush1.msra.mxu0 0.0
        %1783 = vmatprep.subr.mxu0 0.0
        %1784 = vmatpush1.msra.mxu0 0.0
        %1785 = vmatprep.subr.mxu0 0.0
        %1786 = vmatpush1.msra.mxu0 0.0
        %1787 = vmatprep.subr.mxu0 0.0
        %1788 = vmatpush1.msra.mxu0 0.0
        %1789 = vmatprep.subr.mxu0 0.0
        %1790 = vmatpush1.msra.mxu0 0.0
        %1791 = vmatprep.subr.mxu0 0.0
        %1792 = vmatpush1.msra.mxu0 0.0
        %1793 = vmatprep.subr.mxu0 0.0
        %1794 = vmatpush1.msra.mxu0 0.0
        %1795 = vmatprep.subr.mxu0 0.0
        %1796 = vmatpush1.msra.mxu0 0.0
        %1797 = vmatprep.subr.mxu0 0.0
        %1798 = vmatpush1.msra.mxu0 0.0
        %1799 = vmatprep.mubr.f32.mxu0 0.0
        %1800 = vmatmul.mubr.f32.gmra.mrb[0].mxu0 %v1733
        %v1801 = vpop.f32.mrb[0].mxu0
        %v1802 = vadd.f32 0.0, %v1801
        %v1803 = vpop.f32.mrb[0].mxu0
        %1804 = vdwg.mxu0
        %v1806 = vsel %vm1301, %v1657, 0
        %1808 = vmatprep.subr.mxu0 0.0
        %1809 = vmatpush1.msra.mxu0 %v1224
        %1810 = vmatprep.subr.mxu0 0.0
        %1811 = vmatpush1.msra.mxu0 0.0
        %1812 = vmatprep.subr.mxu0 0.0
        %1813 = vmatpush1.msra.mxu0 0.0
        %1814 = vmatprep.subr.mxu0 0.0
        %1815 = vmatpush1.msra.mxu0 0.0
        %1816 = vmatprep.subr.mxu0 0.0
        %1817 = vmatpush1.msra.mxu0 0.0
        %1818 = vmatprep.subr.mxu0 0.0
        %1819 = vmatpush1.msra.mxu0 0.0
        %1820 = vmatprep.subr.mxu0 0.0
        %1821 = vmatpush1.msra.mxu0 0.0
        %1822 = vmatprep.subr.mxu0 0.0
        %1823 = vmatpush1.msra.mxu0 0.0
        %1824 = vmatprep.subr.mxu0 0.0
        %1825 = vmatpush1.msra.mxu0 0.0
        %1826 = vmatprep.subr.mxu0 0.0
        %1827 = vmatpush1.msra.mxu0 0.0
        %1828 = vmatprep.subr.mxu0 0.0
        %1829 = vmatpush1.msra.mxu0 0.0
        %1830 = vmatprep.subr.mxu0 0.0
        %1831 = vmatpush1.msra.mxu0 0.0
        %1832 = vmatprep.subr.mxu0 0.0
        %1833 = vmatpush1.msra.mxu0 0.0
        %1834 = vmatprep.subr.mxu0 0.0
        %1835 = vmatpush1.msra.mxu0 0.0
        %1836 = vmatprep.subr.mxu0 0.0
        %1837 = vmatpush1.msra.mxu0 0.0
        %1838 = vmatprep.subr.mxu0 0.0
        %1839 = vmatpush1.msra.mxu0 0.0
        %1840 = vmatprep.subr.mxu0 0.0
        %1841 = vmatpush1.msra.mxu0 0.0
        %1842 = vmatprep.subr.mxu0 0.0
        %1843 = vmatpush1.msra.mxu0 0.0
        %1844 = vmatprep.subr.mxu0 0.0
        %1845 = vmatpush1.msra.mxu0 0.0
        %1846 = vmatprep.subr.mxu0 0.0
        %1847 = vmatpush1.msra.mxu0 0.0
        %1848 = vmatprep.subr.mxu0 0.0
        %1849 = vmatpush1.msra.mxu0 0.0
        %1850 = vmatprep.subr.mxu0 0.0
        %1851 = vmatpush1.msra.mxu0 0.0
        %1852 = vmatprep.subr.mxu0 0.0
        %1853 = vmatpush1.msra.mxu0 0.0
        %1854 = vmatprep.subr.mxu0 0.0
        %1855 = vmatpush1.msra.mxu0 0.0
        %1856 = vmatprep.subr.mxu0 0.0
        %1857 = vmatpush1.msra.mxu0 0.0
        %1858 = vmatprep.subr.mxu0 0.0
        %1859 = vmatpush1.msra.mxu0 0.0
        %1860 = vmatprep.subr.mxu0 0.0
        %1861 = vmatpush1.msra.mxu0 0.0
        %1862 = vmatprep.subr.mxu0 0.0
        %1863 = vmatpush1.msra.mxu0 0.0
        %1864 = vmatprep.subr.mxu0 0.0
        %1865 = vmatpush1.msra.mxu0 0.0
        %1866 = vmatprep.subr.mxu0 0.0
        %1867 = vmatpush1.msra.mxu0 0.0
        %1868 = vmatprep.subr.mxu0 0.0
        %1869 = vmatpush1.msra.mxu0 0.0
        %1870 = vmatprep.subr.mxu0 0.0
        %1871 = vmatpush1.msra.mxu0 0.0
        %1872 = vmatprep.mubr.f32.mxu0 0.0
        %1873 = vmatmul.mubr.f32.gmra.mrb[0].mxu0 %v1806
        %v1874 = vpop.f32.mrb[0].mxu0
        %v1875 = vadd.f32 0.0, %v1874
        %v1876 = vpop.f32.mrb[0].mxu0
        %1877 = vdwg.mxu0
        %v1879 = vsel %vm1301, %v1658, 0
        %1881 = vmatprep.subr.mxu0 0.0
        %1882 = vmatpush1.msra.mxu0 %v1294
        %1883 = vmatprep.subr.mxu0 0.0
        %1884 = vmatpush1.msra.mxu0 0.0
        %1885 = vmatprep.subr.mxu0 0.0
        %1886 = vmatpush1.msra.mxu0 0.0
        %1887 = vmatprep.subr.mxu0 0.0
        %1888 = vmatpush1.msra.mxu0 0.0
        %1889 = vmatprep.subr.mxu0 0.0
        %1890 = vmatpush1.msra.mxu0 0.0
        %1891 = vmatprep.subr.mxu0 0.0
        %1892 = vmatpush1.msra.mxu0 0.0
        %1893 = vmatprep.subr.mxu0 0.0
        %1894 = vmatpush1.msra.mxu0 0.0
        %1895 = vmatprep.subr.mxu0 0.0
        %1896 = vmatpush1.msra.mxu0 0.0
        %1897 = vmatprep.subr.mxu0 0.0
        %1898 = vmatpush1.msra.mxu0 0.0
        %1899 = vmatprep.subr.mxu0 0.0
        %1900 = vmatpush1.msra.mxu0 0.0
        %1901 = vmatprep.subr.mxu0 0.0
        %1902 = vmatpush1.msra.mxu0 0.0
        %1903 = vmatprep.subr.mxu0 0.0
        %1904 = vmatpush1.msra.mxu0 0.0
        %1905 = vmatprep.subr.mxu0 0.0
        %1906 = vmatpush1.msra.mxu0 0.0
        %1907 = vmatprep.subr.mxu0 0.0
        %1908 = vmatpush1.msra.mxu0 0.0
        %1909 = vmatprep.subr.mxu0 0.0
        %1910 = vmatpush1.msra.mxu0 0.0
        %1911 = vmatprep.subr.mxu0 0.0
        %1912 = vmatpush1.msra.mxu0 0.0
        %1913 = vmatprep.subr.mxu0 0.0
        %1914 = vmatpush1.msra.mxu0 0.0
        %1915 = vmatprep.subr.mxu0 0.0
        %1916 = vmatpush1.msra.mxu0 0.0
        %1917 = vmatprep.subr.mxu0 0.0
        %1918 = vmatpush1.msra.mxu0 0.0
        %1919 = vmatprep.subr.mxu0 0.0
        %1920 = vmatpush1.msra.mxu0 0.0
        %1921 = vmatprep.subr.mxu0 0.0
        %1922 = vmatpush1.msra.mxu0 0.0
        %1923 = vmatprep.subr.mxu0 0.0
        %1924 = vmatpush1.msra.mxu0 0.0
        %1925 = vmatprep.subr.mxu0 0.0
        %1926 = vmatpush1.msra.mxu0 0.0
        %1927 = vmatprep.subr.mxu0 0.0
        %1928 = vmatpush1.msra.mxu0 0.0
        %1929 = vmatprep.subr.mxu0 0.0
        %1930 = vmatpush1.msra.mxu0 0.0
        %1931 = vmatprep.subr.mxu0 0.0
        %1932 = vmatpush1.msra.mxu0 0.0
        %1933 = vmatprep.subr.mxu0 0.0
        %1934 = vmatpush1.msra.mxu0 0.0
        %1935 = vmatprep.subr.mxu0 0.0
        %1936 = vmatpush1.msra.mxu0 0.0
        %1937 = vmatprep.subr.mxu0 0.0
        %1938 = vmatpush1.msra.mxu0 0.0
        %1939 = vmatprep.subr.mxu0 0.0
        %1940 = vmatpush1.msra.mxu0 0.0
        %1941 = vmatprep.subr.mxu0 0.0
        %1942 = vmatpush1.msra.mxu0 0.0
        %1943 = vmatprep.subr.mxu0 0.0
        %1944 = vmatpush1.msra.mxu0 0.0
        %1945 = vmatprep.mubr.f32.mxu0 0.0
        %1946 = vmatmul.mubr.f32.gmra.mrb[0].mxu0 %v1879
        %v1947 = vpop.f32.mrb[0].mxu0
        %v1948 = vadd.f32 0.0, %v1947
        %v1949 = vpop.f32.mrb[0].mxu0
        %1950 = vdwg.mxu0
        %v1951 = vld [vmem:[%s8] sm:$0xff]
        %v1952 = vld [vmem:[%s8 + $0x8] sm:$0xff]
        %v1953 = vld [vmem:[%s8 + $0x10] sm:$0xff]
        %v1954 = vld [vmem:[%s8 + $0x18] sm:$0xff]
        %v1956 = vsel %vm1301, %v1729, 0
        %1958 = vmatprep.subr.mxu0 0.0
        %1959 = vmatpush1.msra.mxu0 %v1951
        %1960 = vmatprep.subr.mxu0 0.0
        %1961 = vmatpush1.msra.mxu0 0.0
        %1962 = vmatprep.subr.mxu0 0.0
        %1963 = vmatpush1.msra.mxu0 0.0
        %1964 = vmatprep.subr.mxu0 0.0
        %1965 = vmatpush1.msra.mxu0 0.0
        %1966 = vmatprep.subr.mxu0 0.0
        %1967 = vmatpush1.msra.mxu0 0.0
        %1968 = vmatprep.subr.mxu0 0.0
        %1969 = vmatpush1.msra.mxu0 0.0
        %1970 = vmatprep.subr.mxu0 0.0
        %1971 = vmatpush1.msra.mxu0 0.0
        %1972 = vmatprep.subr.mxu0 0.0
        %1973 = vmatpush1.msra.mxu0 0.0
        %1974 = vmatprep.subr.mxu0 0.0
        %1975 = vmatpush1.msra.mxu0 0.0
        %1976 = vmatprep.subr.mxu0 0.0
        %1977 = vmatpush1.msra.mxu0 0.0
        %1978 = vmatprep.subr.mxu0 0.0
        %1979 = vmatpush1.msra.mxu0 0.0
        %1980 = vmatprep.subr.mxu0 0.0
        %1981 = vmatpush1.msra.mxu0 0.0
        %1982 = vmatprep.subr.mxu0 0.0
        %1983 = vmatpush1.msra.mxu0 0.0
        %1984 = vmatprep.subr.mxu0 0.0
        %1985 = vmatpush1.msra.mxu0 0.0
        %1986 = vmatprep.subr.mxu0 0.0
        %1987 = vmatpush1.msra.mxu0 0.0
        %1988 = vmatprep.subr.mxu0 0.0
        %1989 = vmatpush1.msra.mxu0 0.0
        %1990 = vmatprep.subr.mxu0 0.0
        %1991 = vmatpush1.msra.mxu0 0.0
        %1992 = vmatprep.subr.mxu0 0.0
        %1993 = vmatpush1.msra.mxu0 0.0
        %1994 = vmatprep.subr.mxu0 0.0
        %1995 = vmatpush1.msra.mxu0 0.0
        %1996 = vmatprep.subr.mxu0 0.0
        %1997 = vmatpush1.msra.mxu0 0.0
        %1998 = vmatprep.subr.mxu0 0.0
        %1999 = vmatpush1.msra.mxu0 0.0
        %2000 = vmatprep.subr.mxu0 0.0
        %2001 = vmatpush1.msra.mxu0 0.0
        %2002 = vmatprep.subr.mxu0 0.0
        %2003 = vmatpush1.msra.mxu0 0.0
        %2004 = vmatprep.subr.mxu0 0.0
        %2005 = vmatpush1.msra.mxu0 0.0
        %2006 = vmatprep.subr.mxu0 0.0
        %2007 = vmatpush1.msra.mxu0 0.0
        %2008 = vmatprep.subr.mxu0 0.0
        %2009 = vmatpush1.msra.mxu0 0.0
        %2010 = vmatprep.subr.mxu0 0.0
        %2011 = vmatpush1.msra.mxu0 0.0
        %2012 = vmatprep.subr.mxu0 0.0
        %2013 = vmatpush1.msra.mxu0 0.0
        %2014 = vmatprep.subr.mxu0 0.0
        %2015 = vmatpush1.msra.mxu0 0.0
        %2016 = vmatprep.subr.mxu0 0.0
        %2017 = vmatpush1.msra.mxu0 0.0
        %2018 = vmatprep.subr.mxu0 0.0
        %2019 = vmatpush1.msra.mxu0 0.0
        %2020 = vmatprep.subr.mxu0 0.0
        %2021 = vmatpush1.msra.mxu0 0.0
        %2022 = vmatprep.mubr.f32.mxu0 0.0
        %2023 = vmatmul.mubr.f32.gmra.mrb[0].mxu0 %v1956
        %v2024 = vpop.f32.mrb[0].mxu0
        %v2025 = vadd.f32 0.0, %v2024
        %v2026 = vpop.f32.mrb[0].mxu0
        %2027 = vdwg.mxu0
        %v2029 = vsel %vm1301, %v1802, 0
        %2031 = vmatprep.subr.mxu0 0.0
        %2032 = vmatpush1.msra.mxu0 %v1952
        %2033 = vmatprep.subr.mxu0 0.0
        %2034 = vmatpush1.msra.mxu0 0.0
        %2035 = vmatprep.subr.mxu0 0.0
        %2036 = vmatpush1.msra.mxu0 0.0
        %2037 = vmatprep.subr.mxu0 0.0
        %2038 = vmatpush1.msra.mxu0 0.0
        %2039 = vmatprep.subr.mxu0 0.0
        %2040 = vmatpush1.msra.mxu0 0.0
        %2041 = vmatprep.subr.mxu0 0.0
        %2042 = vmatpush1.msra.mxu0 0.0
        %2043 = vmatprep.subr.mxu0 0.0
        %2044 = vmatpush1.msra.mxu0 0.0
        %2045 = vmatprep.subr.mxu0 0.0
        %2046 = vmatpush1.msra.mxu0 0.0
        %2047 = vmatprep.subr.mxu0 0.0
        %2048 = vmatpush1.msra.mxu0 0.0
        %2049 = vmatprep.subr.mxu0 0.0
        %2050 = vmatpush1.msra.mxu0 0.0
        %2051 = vmatprep.subr.mxu0 0.0
        %2052 = vmatpush1.msra.mxu0 0.0
        %2053 = vmatprep.subr.mxu0 0.0
        %2054 = vmatpush1.msra.mxu0 0.0
        %2055 = vmatprep.subr.mxu0 0.0
        %2056 = vmatpush1.msra.mxu0 0.0
        %2057 = vmatprep.subr.mxu0 0.0
        %2058 = vmatpush1.msra.mxu0 0.0
        %2059 = vmatprep.subr.mxu0 0.0
        %2060 = vmatpush1.msra.mxu0 0.0
        %2061 = vmatprep.subr.mxu0 0.0
        %2062 = vmatpush1.msra.mxu0 0.0
        %2063 = vmatprep.subr.mxu0 0.0
        %2064 = vmatpush1.msra.mxu0 0.0
        %2065 = vmatprep.subr.mxu0 0.0
        %2066 = vmatpush1.msra.mxu0 0.0
        %2067 = vmatprep.subr.mxu0 0.0
        %2068 = vmatpush1.msra.mxu0 0.0
        %2069 = vmatprep.subr.mxu0 0.0
        %2070 = vmatpush1.msra.mxu0 0.0
        %2071 = vmatprep.subr.mxu0 0.0
        %2072 = vmatpush1.msra.mxu0 0.0
        %2073 = vmatprep.subr.mxu0 0.0
        %2074 = vmatpush1.msra.mxu0 0.0
        %2075 = vmatprep.subr.mxu0 0.0
        %2076 = vmatpush1.msra.mxu0 0.0
        %2077 = vmatprep.subr.mxu0 0.0
        %2078 = vmatpush1.msra.mxu0 0.0
        %2079 = vmatprep.subr.mxu0 0.0
        %2080 = vmatpush1.msra.mxu0 0.0
        %2081 = vmatprep.subr.mxu0 0.0
        %2082 = vmatpush1.msra.mxu0 0.0
        %2083 = vmatprep.subr.mxu0 0.0
        %2084 = vmatpush1.msra.mxu0 0.0
        %2085 = vmatprep.subr.mxu0 0.0
        %2086 = vmatpush1.msra.mxu0 0.0
        %2087 = vmatprep.subr.mxu0 0.0
        %2088 = vmatpush1.msra.mxu0 0.0
        %2089 = vmatprep.subr.mxu0 0.0
        %2090 = vmatpush1.msra.mxu0 0.0
        %2091 = vmatprep.subr.mxu0 0.0
        %2092 = vmatpush1.msra.mxu0 0.0
        %2093 = vmatprep.subr.mxu0 0.0
        %2094 = vmatpush1.msra.mxu0 0.0
        %2095 = vmatprep.mubr.f32.mxu0 0.0
        %2096 = vmatmul.mubr.f32.gmra.mrb[0].mxu0 %v2029
        %v2097 = vpop.f32.mrb[0].mxu0
        %v2098 = vadd.f32 0.0, %v2097
        %v2099 = vpop.f32.mrb[0].mxu0
        %2100 = vdwg.mxu0
        %v2102 = vsel %vm1301, %v1875, 0
        %2104 = vmatprep.subr.mxu0 0.0
        %2105 = vmatpush1.msra.mxu0 %v1953
        %2106 = vmatprep.subr.mxu0 0.0
        %2107 = vmatpush1.msra.mxu0 0.0
        %2108 = vmatprep.subr.mxu0 0.0
        %2109 = vmatpush1.msra.mxu0 0.0
        %2110 = vmatprep.subr.mxu0 0.0
        %2111 = vmatpush1.msra.mxu0 0.0
        %2112 = vmatprep.subr.mxu0 0.0
        %2113 = vmatpush1.msra.mxu0 0.0
        %2114 = vmatprep.subr.mxu0 0.0
        %2115 = vmatpush1.msra.mxu0 0.0
        %2116 = vmatprep.subr.mxu0 0.0
        %2117 = vmatpush1.msra.mxu0 0.0
        %2118 = vmatprep.subr.mxu0 0.0
        %2119 = vmatpush1.msra.mxu0 0.0
        %2120 = vmatprep.subr.mxu0 0.0
        %2121 = vmatpush1.msra.mxu0 0.0
        %2122 = vmatprep.subr.mxu0 0.0
        %2123 = vmatpush1.msra.mxu0 0.0
        %2124 = vmatprep.subr.mxu0 0.0
        %2125 = vmatpush1.msra.mxu0 0.0
        %2126 = vmatprep.subr.mxu0 0.0
        %2127 = vmatpush1.msra.mxu0 0.0
        %2128 = vmatprep.subr.mxu0 0.0
        %2129 = vmatpush1.msra.mxu0 0.0
        %2130 = vmatprep.subr.mxu0 0.0
        %2131 = vmatpush1.msra.mxu0 0.0
        %2132 = vmatprep.subr.mxu0 0.0
        %2133 = vmatpush1.msra.mxu0 0.0
        %2134 = vmatprep.subr.mxu0 0.0
        %2135 = vmatpush1.msra.mxu0 0.0
        %2136 = vmatprep.subr.mxu0 0.0
        %2137 = vmatpush1.msra.mxu0 0.0
        %2138 = vmatprep.subr.mxu0 0.0
        %2139 = vmatpush1.msra.mxu0 0.0
        %2140 = vmatprep.subr.mxu0 0.0
        %2141 = vmatpush1.msra.mxu0 0.0
        %2142 = vmatprep.subr.mxu0 0.0
        %2143 = vmatpush1.msra.mxu0 0.0
        %2144 = vmatprep.subr.mxu0 0.0
        %2145 = vmatpush1.msra.mxu0 0.0
        %2146 = vmatprep.subr.mxu0 0.0
        %2147 = vmatpush1.msra.mxu0 0.0
        %2148 = vmatprep.subr.mxu0 0.0
        %2149 = vmatpush1.msra.mxu0 0.0
        %2150 = vmatprep.subr.mxu0 0.0
        %2151 = vmatpush1.msra.mxu0 0.0
        %2152 = vmatprep.subr.mxu0 0.0
        %2153 = vmatpush1.msra.mxu0 0.0
        %2154 = vmatprep.subr.mxu0 0.0
        %2155 = vmatpush1.msra.mxu0 0.0
        %2156 = vmatprep.subr.mxu0 0.0
        %2157 = vmatpush1.msra.mxu0 0.0
        %2158 = vmatprep.subr.mxu0 0.0
        %2159 = vmatpush1.msra.mxu0 0.0
        %2160 = vmatprep.subr.mxu0 0.0
        %2161 = vmatpush1.msra.mxu0 0.0
        %2162 = vmatprep.subr.mxu0 0.0
        %2163 = vmatpush1.msra.mxu0 0.0
        %2164 = vmatprep.subr.mxu0 0.0
        %2165 = vmatpush1.msra.mxu0 0.0
        %2166 = vmatprep.subr.mxu0 0.0
        %2167 = vmatpush1.msra.mxu0 0.0
        %2168 = vmatprep.mubr.f32.mxu0 0.0
        %2169 = vmatmul.mubr.f32.gmra.mrb[0].mxu0 %v2102
        %v2170 = vpop.f32.mrb[0].mxu0
        %v2171 = vadd.f32 0.0, %v2170
        %v2172 = vpop.f32.mrb[0].mxu0
        %2173 = vdwg.mxu0
        %v2175 = vsel %vm1301, %v1948, 0
        %2177 = vmatprep.subr.mxu0 0.0
        %2178 = vmatpush1.msra.mxu0 %v1954
        %2179 = vmatprep.subr.mxu0 0.0
        %2180 = vmatpush1.msra.mxu0 0.0
        %2181 = vmatprep.subr.mxu0 0.0
        %2182 = vmatpush1.msra.mxu0 0.0
        %2183 = vmatprep.subr.mxu0 0.0
        %2184 = vmatpush1.msra.mxu0 0.0
        %2185 = vmatprep.subr.mxu0 0.0
        %2186 = vmatpush1.msra.mxu0 0.0
        %2187 = vmatprep.subr.mxu0 0.0
        %2188 = vmatpush1.msra.mxu0 0.0
        %2189 = vmatprep.subr.mxu0 0.0
        %2190 = vmatpush1.msra.mxu0 0.0
        %2191 = vmatprep.subr.mxu0 0.0
        %2192 = vmatpush1.msra.mxu0 0.0
        %2193 = vmatprep.subr.mxu0 0.0
        %2194 = vmatpush1.msra.mxu0 0.0
        %2195 = vmatprep.subr.mxu0 0.0
        %2196 = vmatpush1.msra.mxu0 0.0
        %2197 = vmatprep.subr.mxu0 0.0
        %2198 = vmatpush1.msra.mxu0 0.0
        %2199 = vmatprep.subr.mxu0 0.0
        %2200 = vmatpush1.msra.mxu0 0.0
        %2201 = vmatprep.subr.mxu0 0.0
        %2202 = vmatpush1.msra.mxu0 0.0
        %2203 = vmatprep.subr.mxu0 0.0
        %2204 = vmatpush1.msra.mxu0 0.0
        %2205 = vmatprep.subr.mxu0 0.0
        %2206 = vmatpush1.msra.mxu0 0.0
        %2207 = vmatprep.subr.mxu0 0.0
        %2208 = vmatpush1.msra.mxu0 0.0
        %2209 = vmatprep.subr.mxu0 0.0
        %2210 = vmatpush1.msra.mxu0 0.0
        %2211 = vmatprep.subr.mxu0 0.0
        %2212 = vmatpush1.msra.mxu0 0.0
        %2213 = vmatprep.subr.mxu0 0.0
        %2214 = vmatpush1.msra.mxu0 0.0
        %2215 = vmatprep.subr.mxu0 0.0
        %2216 = vmatpush1.msra.mxu0 0.0
        %2217 = vmatprep.subr.mxu0 0.0
        %2218 = vmatpush1.msra.mxu0 0.0
        %2219 = vmatprep.subr.mxu0 0.0
        %2220 = vmatpush1.msra.mxu0 0.0
        %2221 = vmatprep.subr.mxu0 0.0
        %2222 = vmatpush1.msra.mxu0 0.0
        %2223 = vmatprep.subr.mxu0 0.0
        %2224 = vmatpush1.msra.mxu0 0.0
        %2225 = vmatprep.subr.mxu0 0.0
        %2226 = vmatpush1.msra.mxu0 0.0
        %2227 = vmatprep.subr.mxu0 0.0
        %2228 = vmatpush1.msra.mxu0 0.0
        %2229 = vmatprep.subr.mxu0 0.0
        %2230 = vmatpush1.msra.mxu0 0.0
        %2231 = vmatprep.subr.mxu0 0.0
        %2232 = vmatpush1.msra.mxu0 0.0
        %2233 = vmatprep.subr.mxu0 0.0
        %2234 = vmatpush1.msra.mxu0 0.0
        %2235 = vmatprep.subr.mxu0 0.0
        %2236 = vmatpush1.msra.mxu0 0.0
        %2237 = vmatprep.subr.mxu0 0.0
        %2238 = vmatpush1.msra.mxu0 0.0
        %2239 = vmatprep.subr.mxu0 0.0
        %2240 = vmatpush1.msra.mxu0 0.0
        %2241 = vmatprep.mubr.f32.mxu0 0.0
        %2242 = vmatmul.mubr.f32.gmra.mrb[0].mxu0 %v2175
        %v2243 = vpop.f32.mrb[0].mxu0
        %v2244 = vadd.f32 0.0, %v2243
        %v2245 = vpop.f32.mrb[0].mxu0
        %2246 = vdwg.mxu0
        %v2247 = vsel %vm358, %v2025, 0.0
        %v2248 = vsel %vm358, %v2098, 0.0
        %v2249 = vadd.f32 %v2247, %v2248
        %v2250 = vsel %vm358, %v2171, 0.0
        %v2251 = vadd.f32 %v2249, %v2250
        %v2252 = vsel %vm358, %v2244, 0.0
        %v2253 = vadd.f32 %v2251, %v2252
        %v2254 = vld [vmem:[%s9] sm:$0x1]
        %v2256 = vlaneseq
        %v2257 = vshrl.u32 %v2256, 7
        %v2258 = vsub.s32 0, %v2257
        %v2259 = vrot.slane %v2254, %v2258
        %v2261 = vadd.f32 %v2253, %v2259
        %2262 = vst.msk [vmem:[%s350] sm:$0xff] %vm358, %v2261
        %s2263 = sand.u32 %s247, 1
        %s2264 = scalar_lea.sflag [#allocation3], %s2263
        %s2265 = sand.u32 %s247, 1
        %s2266 = smul.addr %s2265, 8
        %s2267 = scalar_lea.vmem [#allocation2], %s2266
        // Predicated region
        $region61: #{tpu_custom_call.1} parent=59 // pred_check
          %p2268 = pneg %p257
        $region62: #{tpu_custom_call.1} parent=59 // pred_check_branch
          %2270 = sbr.rel (%p2268) target = $region64
        $region63: #{tpu_custom_call.1} parent=59 // pred_region
          %s2272 = ssub.s32 128, 128
          %2273 = vsyncadd %s2264, %s2272
          %s2274 = smul.addr %s24, 128
          %s2275 = scalar_lea.hbm %s10, %s2274
          %s2277 = sshll.u32 %s2267, 4
          %s2278 = int_to_ptr.vmem [resolvable:$true] %s2277
          %2280 = dma.vmem_to_hbm [thread:$0]  %s2278, 128, %s2275, %s2264
        $region64: #{tpu_custom_call.1} parent=59 // pred_fallthru
          _
      $region60: #{tpu_custom_call.1} parent=5 // pred_fallthru
        _
      %p2281 = scmp.le.s32.totalorder 2, %s19
      // Predicated region
      $region65: #{tpu_custom_call.1} parent=5 // pred_check
        %p2282 = pneg %p2281
      $region66: #{tpu_custom_call.1} parent=5 // pred_check_branch
        %2284 = sbr.rel (%p2282) target = $region68
      $region67: #{tpu_custom_call.1} parent=5 // pred_region
        %s2285 = ssub.s32 %s19, 2
        // Predicated region
        $region69: #{tpu_custom_call.1} parent=67 // pred_check
          %p2286 = pneg %p263
        $region70: #{tpu_custom_call.1} parent=67 // pred_check_branch
          %2288 = sbr.rel (%p2286) target = $region72
        $region71: #{tpu_custom_call.1} parent=67 // pred_region
          %s2289 = sand.u32 %s248, 1
          %s2290 = scalar_lea.sflag [#allocation3], %s2289
          %s2291 = sand.u32 %s248, 1
          %s2292 = smul.addr %s2291, 8
          %s2293 = scalar_lea.vmem [#allocation2], %s2292
          %2294 = dma.done %s2290, 128
        $region72: #{tpu_custom_call.1} parent=67 // pred_fallthru
          _
      $region68: #{tpu_custom_call.1} parent=5 // pred_fallthru
        _
    $region6: #{tpu_custom_call.1} parent=1 // loop_footer
      %s23 = sadd.s32 1, %s19
    $region7: #{tpu_custom_call.1} parent=1 // loop_footer_branch
      %18 = sbr.rel target = $region3
    $region8: #{tpu_custom_call.1} parent=1 // loop_exit
      _
    %2295 = vsyncpa [#allocation3], 1
    %s2296 = scalar_lea.sflag [#allocation3], 1
    %2297 = vsyncpa %s2296, 1

</llo_original>
